<compile_context>
chip_gen: v7x
topology: tpu7x:2x2x1
jax: 0.10.0
libtpu: 0.0.40
codegen_flags: <defaults>
</compile_context>

<pallas_src>
import jax
import jax.numpy as jnp
from jax import lax
from jax.experimental import pallas as pl
from jax.experimental.pallas import tpu as pltpu


# ----------------------------- fused kernel --------------------------------


def _make_fused_generator_kernel(num_hidden, negative_slope, eps):
    """Build a fused kernel for `num_hidden` (Linear+LeakyReLU+BN) layers
    followed by a final (Linear+Sigmoid) layer.

    Ref order: x, [w_i, bgb_i]*num_hidden, w_f, b_f, out.
    `bgb_i` is a (3, N_i) f32 pack: row 0 = linear bias, row 1 = BN gamma,
    row 2 = BN beta.
    """

    def kernel(*refs):
        x_ref = refs[0]
        o_ref = refs[-1]

        a = x_ref[...]                                   # (B, K0) f32
        inv_b = jnp.float32(1.0 / a.shape[0])
        idx = 1
        for _ in range(num_hidden):
            w_ref = refs[idx]
            p_ref = refs[idx + 1]
            idx += 2

            p = p_ref[...]                               # (3, N) f32
            b, g, be = p[0:1, :], p[1:2, :], p[2:3, :]   # each (1, N)

            # Linear: bf16 x bf16 inputs, f32 accumulation on the MXU.
            h = jnp.dot(a.astype(jnp.bfloat16), w_ref[...],
                        preferred_element_type=jnp.float32)
            h = h + b                                    # (1, N) broadcast
            # LeakyReLU(0.2), max-form (slope < 1).
            h = jnp.maximum(h, negative_slope * h)

            # BatchNorm1d (training mode): per-feature batch mean / biased
            # variance, two-pass (centered) for numerical robustness.
            mean = jnp.sum(h, axis=0, keepdims=True) * inv_b
            d = h - mean                                 # reused for apply
            var = jnp.sum(d * d, axis=0, keepdims=True) * inv_b
            scale = g * lax.rsqrt(var + eps)             # (1, N) cheap math
            a = d * scale + be                           # 2 ops on (B, N)

        wf_ref = refs[idx]
        bf_ref = refs[idx + 1]
        logits = jnp.dot(a.astype(jnp.bfloat16), wf_ref[...],
                         preferred_element_type=jnp.float32) + bf_ref[...]
        o_ref[...] = jax.nn.sigmoid(logits).astype(o_ref.dtype)

    return kernel


# ----------------------------- wrapper --------------------------------------


def generator_forward_pallas(params, z, *, negative_slope=0.2, eps=1e-5):
    hidden = params["hidden"]           # list of (w_bf16[K,N], bgb_f32[3,N])
    wf, bf = params["final"]

    flat_inputs = [z]
    for (w, bgb) in hidden:
        flat_inputs += [w, bgb]
    flat_inputs += [wf, bf]

    B = z.shape[0]
    out_dim = wf.shape[1]

    # Generation-aware resident-VMEM guard: this fused, everything-resident
    # design is only intended for small MLPs. If it is ever scaled up it must
    # be re-tiled (two-pass BN over a batch grid marked "arbitrary",
    # accumulating per-feature sum/sumsq into VMEM scratch, then normalize).
    try:
        vmem_cap = int(pltpu.get_tpu_info().vmem_capacity_bytes)
    except Exception:  # pragma: no cover - conservative fallback (v7x per-TC)
        vmem_cap = 64 * 1024 * 1024
    budget = (3 * vmem_cap) // 4

    resident_bytes = sum(int(a.size) * a.dtype.itemsize for a in flat_inputs)
    max_feat = max([w.shape[1] for (w, _) in hidden] + [out_dim, z.shape[1]])
    act_bytes = 8 * B * max_feat * 4    # a handful of f32 activation slabs
    needed = resident_bytes + act_bytes
    assert needed < budget, (
        "Fused generator kernel exceeds the VMEM budget for this TPU "
        f"generation ({needed} >= {budget} bytes); re-tile before scaling up.")
    vmem_limit = min(vmem_cap, needed + (8 << 20))  # explicit, with slack

    kernel = _make_fused_generator_kernel(len(hidden), negative_slope, eps)
    vmem_spec = pl.BlockSpec(memory_space=pltpu.MemorySpace.VMEM)
    return pl.pallas_call(
        kernel,
        out_shape=jax.ShapeDtypeStruct((B, out_dim), jnp.float32),
        in_specs=[vmem_spec] * len(flat_inputs),
        out_specs=vmem_spec,
        compiler_params=pltpu.CompilerParams(vmem_limit_bytes=vmem_limit),
    )(*flat_inputs)


generator_forward = jax.jit(generator_forward_pallas)


# ----------------------------- params / reference ---------------------------


def init_generator_params(key, noise_dim, output_dim, hidden_dims):
    """Deterministic synthetic parameters (shapes match the torch module).

    Weights are stored as (K, N) (transposed vs. torch's nn.Linear storage) in
    bf16. Per hidden layer the linear bias, BN gamma and BN beta are packed
    into one (3, N) f32 array (rows: bias, gamma, beta).
    """
    dims = [noise_dim] + list(hidden_dims)
    params = {"hidden": [], "final": None}
    for i in range(len(hidden_dims)):
        key, kw, kb = jax.random.split(key, 3)
        fan_in, fan_out = dims[i], dims[i + 1]
        w = (jax.random.normal(kw, (fan_in, fan_out), jnp.float32)
             / jnp.sqrt(fan_in)).astype(jnp.bfloat16)
        b = 0.01 * jax.random.normal(kb, (1, fan_out), jnp.float32)
        gamma = jnp.ones((1, fan_out), jnp.float32)   # BN weight init
        beta = jnp.zeros((1, fan_out), jnp.float32)   # BN bias init
        bgb = jnp.concatenate([b, gamma, beta], axis=0)  # (3, N) pack
        params["hidden"].append((w, bgb))
    key, kw, kb = jax.random.split(key, 3)
    w = (jax.random.normal(kw, (hidden_dims[-1], output_dim), jnp.float32)
         / jnp.sqrt(hidden_dims[-1])).astype(jnp.bfloat16)
    b = 0.01 * jax.random.normal(kb, (1, output_dim), jnp.float32)
    params["final"] = (w, b)
    return params


def generator_forward_ref(params, z, *, negative_slope=0.2, eps=1e-5):
    """Pure-JAX reference with identical numerics (bf16 matmul inputs,
    f32 accumulation, two-pass batch-stat BN, sigmoid)."""
    a = z
    inv_b = jnp.float32(1.0 / z.shape[0])
    for (w, bgb) in params["hidden"]:
        b, g, be = bgb[0:1, :], bgb[1:2, :], bgb[2:3, :]
        h = jnp.dot(a.astype(jnp.bfloat16), w.astype(jnp.bfloat16),
                    preferred_element_type=jnp.float32) + b
        h = jnp.maximum(h, negative_slope * h)
        mean = jnp.sum(h, axis=0, keepdims=True) * inv_b
        d = h - mean
        var = jnp.sum(d * d, axis=0, keepdims=True) * inv_b
        a = d * (g * lax.rsqrt(var + eps)) + be
    wf, bf = params["final"]
    logits = jnp.dot(a.astype(jnp.bfloat16), wf.astype(jnp.bfloat16),
                     preferred_element_type=jnp.float32) + bf
    return jax.nn.sigmoid(logits)


# ----------------------------- driver ----------------------------------------


if __name__ == "__main__":
    # Shapes consistent with the module's architecture (noise -> three hidden
    # Linear+LeakyReLU+BN blocks -> Linear+Sigmoid). Batch is a multiple of
    # the MXU M dimension (per review), feature dims are multiples of 128 for
    # lane-dense blocks; everything still comfortably fits VMEM.
    BATCH = 256
    NOISE_DIM = 32
    HIDDEN_DIMS = [128, 256, 256]
    OUTPUT_DIM = 128

    key = jax.random.PRNGKey(0)
    key, kz, kp = jax.random.split(key, 3)
    z = jax.random.normal(kz, (BATCH, NOISE_DIM), jnp.float32)
    params = init_generator_params(kp, NOISE_DIM, OUTPUT_DIM, HIDDEN_DIMS)

    out = generator_forward(params, z)
    out = jax.block_until_ready(out)

    ref = generator_forward_ref(params, z)
    assert out.shape == (BATCH, OUTPUT_DIM)
    assert bool(jnp.isfinite(out).all())
    assert jnp.allclose(out, ref, atol=2e-3, rtol=2e-3)

    print("KERNEL_OK")
</pallas_src>

<mosaic_0001>
module attributes {stable_mosaic.version = 11 : i64} {
  func.func @kernel(%arg0: memref<256x32xf32, #tpu.memory_space<vmem>>, %arg1: memref<32x128xbf16, #tpu.memory_space<vmem>>, %arg2: memref<3x128xf32, #tpu.memory_space<vmem>>, %arg3: memref<128x256xbf16, #tpu.memory_space<vmem>>, %arg4: memref<3x256xf32, #tpu.memory_space<vmem>>, %arg5: memref<256x256xbf16, #tpu.memory_space<vmem>>, %arg6: memref<3x256xf32, #tpu.memory_space<vmem>>, %arg7: memref<256x128xbf16, #tpu.memory_space<vmem>>, %arg8: memref<1x128xf32, #tpu.memory_space<vmem>>, %arg9: memref<256x128xf32, #tpu.memory_space<vmem>>) attributes {dimension_semantics = [], scalar_prefetch = 0 : i64, scratch_operands = 0 : i64, tpu.core_type = #tpu.core_type<tc>} {
    %c0 = arith.constant 0 : index
    %c0_0 = arith.constant 0 : index
    %0 = vector.load %arg0[%c0, %c0_0] : memref<256x32xf32, #tpu.memory_space<vmem>>, vector<256x32xf32>
    %c0_1 = arith.constant 0 : index
    %c0_2 = arith.constant 0 : index
    %1 = vector.load %arg2[%c0_1, %c0_2] : memref<3x128xf32, #tpu.memory_space<vmem>>, vector<3x128xf32>
    %2 = vector.extract_strided_slice %1 {offsets = [0, 0], sizes = [1, 128], strides = [1, 1]} : vector<3x128xf32> to vector<1x128xf32>
    %3 = vector.extract_strided_slice %1 {offsets = [1, 0], sizes = [1, 128], strides = [1, 1]} : vector<3x128xf32> to vector<1x128xf32>
    %4 = vector.extract_strided_slice %1 {offsets = [2, 0], sizes = [1, 128], strides = [1, 1]} : vector<3x128xf32> to vector<1x128xf32>
    %5 = arith.truncf %0 : vector<256x32xf32> to vector<256x32xbf16>
    %c0_3 = arith.constant 0 : index
    %c0_4 = arith.constant 0 : index
    %6 = vector.load %arg1[%c0_3, %c0_4] : memref<32x128xbf16, #tpu.memory_space<vmem>>, vector<32x128xbf16>
    %cst = arith.constant dense<0.000000e+00> : vector<256x128xf32>
    %7 = tpu.matmul %5, %6, %cst {dimension_numbers = #tpu.dot_dimension_numbers<[1], [0], [0], [1], [0, 0, 1, 1], [], []>} : vector<256x32xbf16>, vector<32x128xbf16>, vector<256x128xf32> -> vector<256x128xf32>
    %8 = vector.broadcast %2 : vector<1x128xf32> to vector<256x128xf32>
    %9 = arith.addf %7, %8 : vector<256x128xf32>
    %cst_5 = arith.constant 2.000000e-01 : f32
    %10 = vector.broadcast %cst_5 : f32 to vector<256x128xf32>
    %11 = arith.mulf %10, %9 : vector<256x128xf32>
    %12 = arith.maximumf %9, %11 : vector<256x128xf32>
    %cst_6 = arith.constant dense<0.000000e+00> : vector<128xf32>
    %13 = vector.multi_reduction <add>, %12, %cst_6 [0] : vector<256x128xf32> to vector<128xf32>
    %14 = vector.shape_cast %13 : vector<128xf32> to vector<1x128xf32>
    %cst_7 = arith.constant 3.906250e-03 : f32
    %15 = vector.broadcast %cst_7 : f32 to vector<1x128xf32>
    %16 = arith.mulf %14, %15 : vector<1x128xf32>
    %17 = vector.broadcast %16 : vector<1x128xf32> to vector<256x128xf32>
    %18 = arith.subf %12, %17 : vector<256x128xf32>
    %19 = arith.mulf %18, %18 : vector<256x128xf32>
    %cst_8 = arith.constant dense<0.000000e+00> : vector<128xf32>
    %20 = vector.multi_reduction <add>, %19, %cst_8 [0] : vector<256x128xf32> to vector<128xf32>
    %21 = vector.shape_cast %20 : vector<128xf32> to vector<1x128xf32>
    %cst_9 = arith.constant 3.906250e-03 : f32
    %22 = vector.broadcast %cst_9 : f32 to vector<1x128xf32>
    %23 = arith.mulf %21, %22 : vector<1x128xf32>
    %cst_10 = arith.constant 9.99999974E-6 : f32
    %24 = vector.broadcast %cst_10 : f32 to vector<1x128xf32>
    %25 = arith.addf %23, %24 : vector<1x128xf32>
    %26 = math.rsqrt %25 : vector<1x128xf32>
    %27 = arith.mulf %3, %26 : vector<1x128xf32>
    %28 = vector.broadcast %27 : vector<1x128xf32> to vector<256x128xf32>
    %29 = arith.mulf %18, %28 : vector<256x128xf32>
    %30 = vector.broadcast %4 : vector<1x128xf32> to vector<256x128xf32>
    %31 = arith.addf %29, %30 : vector<256x128xf32>
    %c0_11 = arith.constant 0 : index
    %c0_12 = arith.constant 0 : index
    %32 = vector.load %arg4[%c0_11, %c0_12] : memref<3x256xf32, #tpu.memory_space<vmem>>, vector<3x256xf32>
    %33 = vector.extract_strided_slice %32 {offsets = [0, 0], sizes = [1, 256], strides = [1, 1]} : vector<3x256xf32> to vector<1x256xf32>
    %34 = vector.extract_strided_slice %32 {offsets = [1, 0], sizes = [1, 256], strides = [1, 1]} : vector<3x256xf32> to vector<1x256xf32>
    %35 = vector.extract_strided_slice %32 {offsets = [2, 0], sizes = [1, 256], strides = [1, 1]} : vector<3x256xf32> to vector<1x256xf32>
    %36 = arith.truncf %31 : vector<256x128xf32> to vector<256x128xbf16>
    %c0_13 = arith.constant 0 : index
    %c0_14 = arith.constant 0 : index
    %37 = vector.load %arg3[%c0_13, %c0_14] : memref<128x256xbf16, #tpu.memory_space<vmem>>, vector<128x256xbf16>
    %cst_15 = arith.constant dense<0.000000e+00> : vector<256x256xf32>
    %38 = tpu.matmul %36, %37, %cst_15 {dimension_numbers = #tpu.dot_dimension_numbers<[1], [0], [0], [1], [0, 0, 1, 1], [], []>} : vector<256x128xbf16>, vector<128x256xbf16>, vector<256x256xf32> -> vector<256x256xf32>
    %39 = vector.broadcast %33 : vector<1x256xf32> to vector<256x256xf32>
    %40 = arith.addf %38, %39 : vector<256x256xf32>
    %cst_16 = arith.constant 2.000000e-01 : f32
    %41 = vector.broadcast %cst_16 : f32 to vector<256x256xf32>
    %42 = arith.mulf %41, %40 : vector<256x256xf32>
    %43 = arith.maximumf %40, %42 : vector<256x256xf32>
    %cst_17 = arith.constant dense<0.000000e+00> : vector<256xf32>
    %44 = vector.multi_reduction <add>, %43, %cst_17 [0] : vector<256x256xf32> to vector<256xf32>
    %45 = vector.shape_cast %44 : vector<256xf32> to vector<1x256xf32>
    %cst_18 = arith.constant 3.906250e-03 : f32
    %46 = vector.broadcast %cst_18 : f32 to vector<1x256xf32>
    %47 = arith.mulf %45, %46 : vector<1x256xf32>
    %48 = vector.broadcast %47 : vector<1x256xf32> to vector<256x256xf32>
    %49 = arith.subf %43, %48 : vector<256x256xf32>
    %50 = arith.mulf %49, %49 : vector<256x256xf32>
    %cst_19 = arith.constant dense<0.000000e+00> : vector<256xf32>
    %51 = vector.multi_reduction <add>, %50, %cst_19 [0] : vector<256x256xf32> to vector<256xf32>
    %52 = vector.shape_cast %51 : vector<256xf32> to vector<1x256xf32>
    %cst_20 = arith.constant 3.906250e-03 : f32
    %53 = vector.broadcast %cst_20 : f32 to vector<1x256xf32>
    %54 = arith.mulf %52, %53 : vector<1x256xf32>
    %cst_21 = arith.constant 9.99999974E-6 : f32
    %55 = vector.broadcast %cst_21 : f32 to vector<1x256xf32>
    %56 = arith.addf %54, %55 : vector<1x256xf32>
    %57 = math.rsqrt %56 : vector<1x256xf32>
    %58 = arith.mulf %34, %57 : vector<1x256xf32>
    %59 = vector.broadcast %58 : vector<1x256xf32> to vector<256x256xf32>
    %60 = arith.mulf %49, %59 : vector<256x256xf32>
    %61 = vector.broadcast %35 : vector<1x256xf32> to vector<256x256xf32>
    %62 = arith.addf %60, %61 : vector<256x256xf32>
    %c0_22 = arith.constant 0 : index
    %c0_23 = arith.constant 0 : index
    %63 = vector.load %arg6[%c0_22, %c0_23] : memref<3x256xf32, #tpu.memory_space<vmem>>, vector<3x256xf32>
    %64 = vector.extract_strided_slice %63 {offsets = [0, 0], sizes = [1, 256], strides = [1, 1]} : vector<3x256xf32> to vector<1x256xf32>
    %65 = vector.extract_strided_slice %63 {offsets = [1, 0], sizes = [1, 256], strides = [1, 1]} : vector<3x256xf32> to vector<1x256xf32>
    %66 = vector.extract_strided_slice %63 {offsets = [2, 0], sizes = [1, 256], strides = [1, 1]} : vector<3x256xf32> to vector<1x256xf32>
    %67 = arith.truncf %62 : vector<256x256xf32> to vector<256x256xbf16>
    %c0_24 = arith.constant 0 : index
    %c0_25 = arith.constant 0 : index
    %68 = vector.load %arg5[%c0_24, %c0_25] : memref<256x256xbf16, #tpu.memory_space<vmem>>, vector<256x256xbf16>
    %cst_26 = arith.constant dense<0.000000e+00> : vector<256x256xf32>
    %69 = tpu.matmul %67, %68, %cst_26 {dimension_numbers = #tpu.dot_dimension_numbers<[1], [0], [0], [1], [0, 0, 1, 1], [], []>} : vector<256x256xbf16>, vector<256x256xbf16>, vector<256x256xf32> -> vector<256x256xf32>
    %70 = vector.broadcast %64 : vector<1x256xf32> to vector<256x256xf32>
    %71 = arith.addf %69, %70 : vector<256x256xf32>
    %cst_27 = arith.constant 2.000000e-01 : f32
    %72 = vector.broadcast %cst_27 : f32 to vector<256x256xf32>
    %73 = arith.mulf %72, %71 : vector<256x256xf32>
    %74 = arith.maximumf %71, %73 : vector<256x256xf32>
    %cst_28 = arith.constant dense<0.000000e+00> : vector<256xf32>
    %75 = vector.multi_reduction <add>, %74, %cst_28 [0] : vector<256x256xf32> to vector<256xf32>
    %76 = vector.shape_cast %75 : vector<256xf32> to vector<1x256xf32>
    %cst_29 = arith.constant 3.906250e-03 : f32
    %77 = vector.broadcast %cst_29 : f32 to vector<1x256xf32>
    %78 = arith.mulf %76, %77 : vector<1x256xf32>
    %79 = vector.broadcast %78 : vector<1x256xf32> to vector<256x256xf32>
    %80 = arith.subf %74, %79 : vector<256x256xf32>
    %81 = arith.mulf %80, %80 : vector<256x256xf32>
    %cst_30 = arith.constant dense<0.000000e+00> : vector<256xf32>
    %82 = vector.multi_reduction <add>, %81, %cst_30 [0] : vector<256x256xf32> to vector<256xf32>
    %83 = vector.shape_cast %82 : vector<256xf32> to vector<1x256xf32>
    %cst_31 = arith.constant 3.906250e-03 : f32
    %84 = vector.broadcast %cst_31 : f32 to vector<1x256xf32>
    %85 = arith.mulf %83, %84 : vector<1x256xf32>
    %cst_32 = arith.constant 9.99999974E-6 : f32
    %86 = vector.broadcast %cst_32 : f32 to vector<1x256xf32>
    %87 = arith.addf %85, %86 : vector<1x256xf32>
    %88 = math.rsqrt %87 : vector<1x256xf32>
    %89 = arith.mulf %65, %88 : vector<1x256xf32>
    %90 = vector.broadcast %89 : vector<1x256xf32> to vector<256x256xf32>
    %91 = arith.mulf %80, %90 : vector<256x256xf32>
    %92 = vector.broadcast %66 : vector<1x256xf32> to vector<256x256xf32>
    %93 = arith.addf %91, %92 : vector<256x256xf32>
    %94 = arith.truncf %93 : vector<256x256xf32> to vector<256x256xbf16>
    %c0_33 = arith.constant 0 : index
    %c0_34 = arith.constant 0 : index
    %95 = vector.load %arg7[%c0_33, %c0_34] : memref<256x128xbf16, #tpu.memory_space<vmem>>, vector<256x128xbf16>
    %cst_35 = arith.constant dense<0.000000e+00> : vector<256x128xf32>
    %96 = tpu.matmul %94, %95, %cst_35 {dimension_numbers = #tpu.dot_dimension_numbers<[1], [0], [0], [1], [0, 0, 1, 1], [], []>} : vector<256x256xbf16>, vector<256x128xbf16>, vector<256x128xf32> -> vector<256x128xf32>
    %c0_36 = arith.constant 0 : index
    %c0_37 = arith.constant 0 : index
    %97 = vector.load %arg8[%c0_36, %c0_37] : memref<1x128xf32, #tpu.memory_space<vmem>>, vector<1x128xf32>
    %98 = vector.broadcast %97 : vector<1x128xf32> to vector<256x128xf32>
    %99 = arith.addf %96, %98 : vector<256x128xf32>
    %100 = arith.negf %99 : vector<256x128xf32>
    %101 = math.exp %100 : vector<256x128xf32>
    %cst_38 = arith.constant 1.000000e+00 : f32
    %102 = vector.broadcast %cst_38 : f32 to vector<256x128xf32>
    %103 = arith.addf %102, %101 : vector<256x128xf32>
    %104 = arith.divf %102, %103 : vector<256x128xf32>
    %c0_39 = arith.constant 0 : index
    %c0_40 = arith.constant 0 : index
    %105 = vector.load %arg9[%c0_39, %c0_40] : memref<256x128xf32, #tpu.memory_space<vmem>>, vector<256x128xf32>
    tpu.vector_store %arg9[%c0_39, %c0_40], %104 {strides = array<i32>} : memref<256x128xf32, #tpu.memory_space<vmem>>, vector<256x128xf32>,
    return
  }
}

</mosaic_0001>

<llo_original>
// kernel: generator_forward_pallas.1
$region0: #{generator_forward_pallas.1}
  #allocation0 [shape = 'u32[]', space=smem, size = 0x4, offset = 0x4, fixed_abs, tag = 'smem constant byte address 0x4 - core index']
  #allocation1 [shape = 'u32[144,128]{1,0:T(1,128)}', space=vmem, size = 0x12000, scoped, tag = 'internal scratch']
  %s0 = inlined_call_operand.vmem [shape: f32[256,32], index: 0, kind: input, shape index: {}]
  %s1 = inlined_call_operand.vmem [shape: bf16[32,128], index: 1, kind: input, shape index: {}]
  %s2 = inlined_call_operand.vmem [shape: f32[3,128], index: 2, kind: input, shape index: {}]
  %s3 = inlined_call_operand.hbm [shape: bf16[128,256], index: 3, kind: input, shape index: {}]
  %s4 = inlined_call_operand.vmem [shape: f32[3,256], index: 4, kind: input, shape index: {}]
  %s5 = inlined_call_operand.vmem [shape: bf16[256,256], index: 5, kind: input, shape index: {}]
  %s6 = inlined_call_operand.vmem [shape: f32[3,256], index: 6, kind: input, shape index: {}]
  %s7 = inlined_call_operand.hbm [shape: bf16[256,128], index: 7, kind: input, shape index: {}]
  %s8 = inlined_call_operand.vmem [shape: f32[1,128], index: 8, kind: input, shape index: {}]
  %s9 = inlined_call_operand.hbm [shape: f32[256,128], index: 9, kind: output, shape index: {}]
  %s10 = sld [smem:[#allocation0]]
  $region54: #{generator_forward_pallas.1} parent=0
    _
  %s12 = ssub.s32 1, %s10
  %s13 = scalar_select 0, %s12, %s10
  $region1: #{generator_forward_pallas.1} parent=0
    #allocation2 [shape = 'u8[65536]{0}', space=vmem, size = 0x10000, scoped, tag = 'input window, operand 3, single buffered']
    #allocation3 [shape = 's32[1]{0}', space=sflag, size = 0x4, scoped, tag = 'scoped memory for generator_forward_pallas.1']
    #allocation4 [shape = 's32[1]{0}', space=sflag, size = 0x4, scoped, tag = 'scoped memory for generator_forward_pallas.1']
    #allocation5 [shape = 'u8[65536]{0}', space=vmem, size = 0x10000, scoped, tag = 'input window, operand 7, single buffered']
    #allocation6 [shape = 's32[1]{0}', space=sflag, size = 0x4, scoped, tag = 'scoped memory for generator_forward_pallas.1']
    #allocation7 [shape = 'u8[131072]{0}', space=vmem, size = 0x20000, scoped, tag = 'output window, operand 0, single buffered']
    %14 = vsyncpa [#allocation3], 0
    %15 = vsyncpa [#allocation6], 0
    %16 = vsyncpa [#allocation4], 0
    // Predicated region
    $region2: #{generator_forward_pallas.1} parent=1 // pred_check
      _
    $region3: #{generator_forward_pallas.1} parent=1 // pred_check_branch
      %18 = sbr.rel (0) target = $region5
    $region4: #{generator_forward_pallas.1} parent=1 // pred_region
      _
    $region5: #{generator_forward_pallas.1} parent=1 // pred_fallthru
      _
    // Predicated region
    $region6: #{generator_forward_pallas.1} parent=1 // pred_check
      _
    $region7: #{generator_forward_pallas.1} parent=1 // pred_check_branch
      %20 = sbr.rel (0) target = $region9
    $region8: #{generator_forward_pallas.1} parent=1 // pred_region
      _
    $region9: #{generator_forward_pallas.1} parent=1 // pred_fallthru
      _
    // Predicated region
    $region10: #{generator_forward_pallas.1} parent=1 // pred_check
      _
    $region11: #{generator_forward_pallas.1} parent=1 // pred_check_branch
      %22 = sbr.rel (0) target = $region13
    $region12: #{generator_forward_pallas.1} parent=1 // pred_region
      _
    $region13: #{generator_forward_pallas.1} parent=1 // pred_fallthru
      _
    // Predicated region
    $region14: #{generator_forward_pallas.1} parent=1 // pred_check
      _
    $region15: #{generator_forward_pallas.1} parent=1 // pred_check_branch
      %24 = sbr.rel (0) target = $region17
    $region16: #{generator_forward_pallas.1} parent=1 // pred_region
      %s26 = ssub.s32 2048, 2048
      %27 = vsyncadd [#allocation3], %s26
      %s28 = sshll.u32 [#allocation2], 4
      %s29 = int_to_ptr.vmem [resolvable:$true] %s28
      %34 = dma.hbm_to_vmem [thread:$0]  %s3, 2048, %s29, [#allocation3], 128, 128, 8
    $region17: #{generator_forward_pallas.1} parent=1 // pred_fallthru
      _
    // Predicated region
    $region18: #{generator_forward_pallas.1} parent=1 // pred_check
      _
    $region19: #{generator_forward_pallas.1} parent=1 // pred_check_branch
      %36 = sbr.rel (0) target = $region21
    $region20: #{generator_forward_pallas.1} parent=1 // pred_region
      _
    $region21: #{generator_forward_pallas.1} parent=1 // pred_fallthru
      _
    // Predicated region
    $region22: #{generator_forward_pallas.1} parent=1 // pred_check
      _
    $region23: #{generator_forward_pallas.1} parent=1 // pred_check_branch
      %38 = sbr.rel (0) target = $region25
    $region24: #{generator_forward_pallas.1} parent=1 // pred_region
      _
    $region25: #{generator_forward_pallas.1} parent=1 // pred_fallthru
      _
    // Predicated region
    $region26: #{generator_forward_pallas.1} parent=1 // pred_check
      _
    $region27: #{generator_forward_pallas.1} parent=1 // pred_check_branch
      %40 = sbr.rel (0) target = $region29
    $region28: #{generator_forward_pallas.1} parent=1 // pred_region
      _
    $region29: #{generator_forward_pallas.1} parent=1 // pred_fallthru
      _
    // Predicated region
    $region30: #{generator_forward_pallas.1} parent=1 // pred_check
      _
    $region31: #{generator_forward_pallas.1} parent=1 // pred_check_branch
      %42 = sbr.rel (0) target = $region33
    $region32: #{generator_forward_pallas.1} parent=1 // pred_region
      %s44 = ssub.s32 2048, 2048
      %45 = vsyncadd [#allocation6], %s44
      %s46 = sshll.u32 [#allocation5], 4
      %s47 = int_to_ptr.vmem [resolvable:$true] %s46
      %52 = dma.hbm_to_vmem [thread:$0]  %s7, 2048, %s47, [#allocation6], 64, 64, 4
    $region33: #{generator_forward_pallas.1} parent=1 // pred_fallthru
      _
    // Predicated region
    $region34: #{generator_forward_pallas.1} parent=1 // pred_check
      _
    $region35: #{generator_forward_pallas.1} parent=1 // pred_check_branch
      %54 = sbr.rel (0) target = $region37
    $region36: #{generator_forward_pallas.1} parent=1 // pred_region
      _
    $region37: #{generator_forward_pallas.1} parent=1 // pred_fallthru
      _
    // Predicated region
    $region38: #{generator_forward_pallas.1} parent=1 // pred_check
      _
    $region39: #{generator_forward_pallas.1} parent=1 // pred_check_branch
      %56 = sbr.rel (0) target = $region41
    $region40: #{generator_forward_pallas.1} parent=1 // pred_region
      %57 = dma.done [#allocation3], 2048
    $region41: #{generator_forward_pallas.1} parent=1 // pred_fallthru
      _
    // Predicated region
    $region42: #{generator_forward_pallas.1} parent=1 // pred_check
      _
    $region43: #{generator_forward_pallas.1} parent=1 // pred_check_branch
      %59 = sbr.rel (0) target = $region45
    $region44: #{generator_forward_pallas.1} parent=1 // pred_region
      %60 = dma.done [#allocation6], 2048
    $region45: #{generator_forward_pallas.1} parent=1 // pred_fallthru
      _
    %v62 = vld [vmem:[%s0] sm:$0xff]
    %v63 = vld [vmem:[%s0 + $0x8] sm:$0xff]
    %v64 = vld [vmem:[%s0 + $0x10] sm:$0xff]
    %v65 = vld [vmem:[%s0 + $0x18] sm:$0xff]
    %v66 = vld [vmem:[%s0 + $0x20] sm:$0xff]
    %v67 = vld [vmem:[%s0 + $0x28] sm:$0xff]
    %v68 = vld [vmem:[%s0 + $0x30] sm:$0xff]
    %v69 = vld [vmem:[%s0 + $0x38] sm:$0xff]
    %v70 = vld [vmem:[%s0 + $0x40] sm:$0xff]
    %v71 = vld [vmem:[%s0 + $0x48] sm:$0xff]
    %v72 = vld [vmem:[%s0 + $0x50] sm:$0xff]
    %v73 = vld [vmem:[%s0 + $0x58] sm:$0xff]
    %v74 = vld [vmem:[%s0 + $0x60] sm:$0xff]
    %v75 = vld [vmem:[%s0 + $0x68] sm:$0xff]
    %v76 = vld [vmem:[%s0 + $0x70] sm:$0xff]
    %v77 = vld [vmem:[%s0 + $0x78] sm:$0xff]
    %v78 = vld [vmem:[%s0 + $0x80] sm:$0xff]
    %v79 = vld [vmem:[%s0 + $0x88] sm:$0xff]
    %v80 = vld [vmem:[%s0 + $0x90] sm:$0xff]
    %v81 = vld [vmem:[%s0 + $0x98] sm:$0xff]
    %v82 = vld [vmem:[%s0 + $0xa0] sm:$0xff]
    %v83 = vld [vmem:[%s0 + $0xa8] sm:$0xff]
    %v84 = vld [vmem:[%s0 + $0xb0] sm:$0xff]
    %v85 = vld [vmem:[%s0 + $0xb8] sm:$0xff]
    %v86 = vld [vmem:[%s0 + $0xc0] sm:$0xff]
    %v87 = vld [vmem:[%s0 + $0xc8] sm:$0xff]
    %v88 = vld [vmem:[%s0 + $0xd0] sm:$0xff]
    %v89 = vld [vmem:[%s0 + $0xd8] sm:$0xff]
    %v90 = vld [vmem:[%s0 + $0xe0] sm:$0xff]
    %v91 = vld [vmem:[%s0 + $0xe8] sm:$0xff]
    %v92 = vld [vmem:[%s0 + $0xf0] sm:$0xff]
    %v93 = vld [vmem:[%s0 + $0xf8] sm:$0xff]
    %v94 = vld [vmem:[%s2] sm:$0x7]
    %v95 = vpack.c.bf16 %v63, %v62
    %v96 = vpack.c.bf16 %v65, %v64
    %v97 = vpack.c.bf16 %v67, %v66
    %v98 = vpack.c.bf16 %v69, %v68
    %v99 = vpack.c.bf16 %v71, %v70
    %v100 = vpack.c.bf16 %v73, %v72
    %v101 = vpack.c.bf16 %v75, %v74
    %v102 = vpack.c.bf16 %v77, %v76
    %v103 = vpack.c.bf16 %v79, %v78
    %v104 = vpack.c.bf16 %v81, %v80
    %v105 = vpack.c.bf16 %v83, %v82
    %v106 = vpack.c.bf16 %v85, %v84
    %v107 = vpack.c.bf16 %v87, %v86
    %v108 = vpack.c.bf16 %v89, %v88
    %v109 = vpack.c.bf16 %v91, %v90
    %v110 = vpack.c.bf16 %v93, %v92
    %v111 = vld [vmem:[%s1] sm:$0xf]
    %v112 = vld [vmem:[%s1 + $0x4] sm:$0xf]
    %v113 = vld [vmem:[%s1 + $0x8] sm:$0xf]
    %v114 = vld [vmem:[%s1 + $0xc] sm:$0xf]
    %v115 = vlaneseq
    %v116 = vshrl.u32 %v115, 7
    %v117 = vsub.s32 0, %v116
    %v118 = vrot.slane %v94, %v117
    %v123 = vunpack.c.l.b16 %v111
    %v124 = vunpack.c.l.b16 %v112
    %v125 = vunpack.c.l.b16 %v113
    %v126 = vunpack.c.l.b16 %v114
    %v127 = vpack.c.b16 %v124, %v123
    %v128 = vpack.c.b16 %v126, %v125
    %vm131 = vcmask 261120
    %v133 = vsel %vm131, %v95, 0
    %v136 = vsel %vm131, %v96, 0
    %v139 = vsel %vm131, %v97, 0
    %v142 = vsel %vm131, %v98, 0
    %v145 = vsel %vm131, %v99, 0
    %v148 = vsel %vm131, %v100, 0
    %v151 = vsel %vm131, %v101, 0
    %v154 = vsel %vm131, %v102, 0
    %v157 = vsel %vm131, %v103, 0
    %v160 = vsel %vm131, %v104, 0
    %v163 = vsel %vm131, %v105, 0
    %v166 = vsel %vm131, %v106, 0
    %v169 = vsel %vm131, %v107, 0
    %v172 = vsel %vm131, %v108, 0
    %v175 = vsel %vm131, %v109, 0
    %v178 = vsel %vm131, %v110, 0
    %180 = vmatprep.subr.bf16.mxu0 0
    %181 = vmatpush1.bf16.msra.mxu0 %v127
    %182 = vmatprep.subr.bf16.mxu0 0
    %183 = vmatpush1.bf16.msra.mxu0 %v128
    %184 = vmatprep.subr.bf16.mxu0 0
    %185 = vmatpush1.bf16.msra.mxu0 0
    %186 = vmatprep.subr.bf16.mxu0 0
    %187 = vmatpush1.bf16.msra.mxu0 0
    %188 = vmatprep.subr.bf16.mxu0 0
    %189 = vmatpush1.bf16.msra.mxu0 0
    %190 = vmatprep.subr.bf16.mxu0 0
    %191 = vmatpush1.bf16.msra.mxu0 0
    %192 = vmatprep.subr.bf16.mxu0 0
    %193 = vmatpush1.bf16.msra.mxu0 0
    %194 = vmatprep.subr.bf16.mxu0 0
    %195 = vmatpush1.bf16.msra.mxu0 0
    %196 = vmatprep.subr.bf16.mxu0 0
    %197 = vmatpush1.bf16.msra.mxu0 0
    %198 = vmatprep.subr.bf16.mxu0 0
    %199 = vmatpush1.bf16.msra.mxu0 0
    %200 = vmatprep.subr.bf16.mxu0 0
    %201 = vmatpush1.bf16.msra.mxu0 0
    %202 = vmatprep.subr.bf16.mxu0 0
    %203 = vmatpush1.bf16.msra.mxu0 0
    %204 = vmatprep.subr.bf16.mxu0 0
    %205 = vmatpush1.bf16.msra.mxu0 0
    %206 = vmatprep.subr.bf16.mxu0 0
    %207 = vmatpush1.bf16.msra.mxu0 0
    %208 = vmatprep.subr.bf16.mxu0 0
    %209 = vmatpush1.bf16.msra.mxu0 0
    %210 = vmatprep.subr.bf16.mxu0 0
    %211 = vmatpush1.bf16.msra.mxu0 0
    %212 = vmatprep.mubr.bf16.mxu0 0
    %213 = vmatmul.mubr.bf16.gmra.mrb[0].mxu0 %v133
    %v214 = vpop.f32.mrb[0].mxu0
    %v215 = vadd.f32 %v118, %v214
    %v216 = vpop.f32.mrb[0].mxu0
    %v217 = vpop.f32.mrb[0].mxu0
    %v218 = vadd.f32 %v118, %v217
    %v219 = vpop.f32.mrb[0].mxu0
    %220 = vmatprep.mubr.bf16.mxu0 0
    %221 = vmatmul.mubr.bf16.gmra.mrb[0].mxu0 %v136
    %v222 = vpop.f32.mrb[0].mxu0
    %v223 = vadd.f32 %v118, %v222
    %v224 = vpop.f32.mrb[0].mxu0
    %v225 = vpop.f32.mrb[0].mxu0
    %v226 = vadd.f32 %v118, %v225
    %v227 = vpop.f32.mrb[0].mxu0
    %228 = vmatprep.mubr.bf16.mxu0 0
    %229 = vmatmul.mubr.bf16.gmra.mrb[0].mxu0 %v139
    %v230 = vpop.f32.mrb[0].mxu0
    %v231 = vadd.f32 %v118, %v230
    %v232 = vpop.f32.mrb[0].mxu0
    %v233 = vpop.f32.mrb[0].mxu0
    %v234 = vadd.f32 %v118, %v233
    %v235 = vpop.f32.mrb[0].mxu0
    %236 = vmatprep.mubr.bf16.mxu0 0
    %237 = vmatmul.mubr.bf16.gmra.mrb[0].mxu0 %v142
    %v238 = vpop.f32.mrb[0].mxu0
    %v239 = vadd.f32 %v118, %v238
    %v240 = vpop.f32.mrb[0].mxu0
    %v241 = vpop.f32.mrb[0].mxu0
    %v242 = vadd.f32 %v118, %v241
    %v243 = vpop.f32.mrb[0].mxu0
    %244 = vmatprep.mubr.bf16.mxu0 0
    %245 = vmatmul.mubr.bf16.gmra.mrb[0].mxu0 %v145
    %v246 = vpop.f32.mrb[0].mxu0
    %v247 = vadd.f32 %v118, %v246
    %v248 = vpop.f32.mrb[0].mxu0
    %v249 = vpop.f32.mrb[0].mxu0
    %v250 = vadd.f32 %v118, %v249
    %v251 = vpop.f32.mrb[0].mxu0
    %252 = vmatprep.mubr.bf16.mxu0 0
    %253 = vmatmul.mubr.bf16.gmra.mrb[0].mxu0 %v148
    %v254 = vpop.f32.mrb[0].mxu0
    %v255 = vadd.f32 %v118, %v254
    %v256 = vpop.f32.mrb[0].mxu0
    %v257 = vpop.f32.mrb[0].mxu0
    %v258 = vadd.f32 %v118, %v257
    %v259 = vpop.f32.mrb[0].mxu0
    %260 = vmatprep.mubr.bf16.mxu0 0
    %261 = vmatmul.mubr.bf16.gmra.mrb[0].mxu0 %v151
    %v262 = vpop.f32.mrb[0].mxu0
    %v263 = vadd.f32 %v118, %v262
    %v264 = vpop.f32.mrb[0].mxu0
    %v265 = vpop.f32.mrb[0].mxu0
    %v266 = vadd.f32 %v118, %v265
    %v267 = vpop.f32.mrb[0].mxu0
    %268 = vmatprep.mubr.bf16.mxu0 0
    %269 = vmatmul.mubr.bf16.gmra.mrb[0].mxu0 %v154
    %v270 = vpop.f32.mrb[0].mxu0
    %v271 = vadd.f32 %v118, %v270
    %v272 = vpop.f32.mrb[0].mxu0
    %v273 = vpop.f32.mrb[0].mxu0
    %v274 = vadd.f32 %v118, %v273
    %v275 = vpop.f32.mrb[0].mxu0
    %276 = vmatprep.mubr.bf16.mxu0 0
    %277 = vmatmul.mubr.bf16.gmra.mrb[0].mxu0 %v157
    %v278 = vpop.f32.mrb[0].mxu0
    %v279 = vadd.f32 %v118, %v278
    %v280 = vpop.f32.mrb[0].mxu0
    %v281 = vpop.f32.mrb[0].mxu0
    %v282 = vadd.f32 %v118, %v281
    %v283 = vpop.f32.mrb[0].mxu0
    %284 = vmatprep.mubr.bf16.mxu0 0
    %285 = vmatmul.mubr.bf16.gmra.mrb[0].mxu0 %v160
    %v286 = vpop.f32.mrb[0].mxu0
    %v287 = vadd.f32 %v118, %v286
    %v288 = vpop.f32.mrb[0].mxu0
    %v289 = vpop.f32.mrb[0].mxu0
    %v290 = vadd.f32 %v118, %v289
    %v291 = vpop.f32.mrb[0].mxu0
    %292 = vmatprep.mubr.bf16.mxu0 0
    %293 = vmatmul.mubr.bf16.gmra.mrb[0].mxu0 %v163
    %v294 = vpop.f32.mrb[0].mxu0
    %v295 = vadd.f32 %v118, %v294
    %v296 = vpop.f32.mrb[0].mxu0
    %v297 = vpop.f32.mrb[0].mxu0
    %v298 = vadd.f32 %v118, %v297
    %v299 = vpop.f32.mrb[0].mxu0
    %300 = vmatprep.mubr.bf16.mxu0 0
    %301 = vmatmul.mubr.bf16.gmra.mrb[0].mxu0 %v166
    %v302 = vpop.f32.mrb[0].mxu0
    %v303 = vadd.f32 %v118, %v302
    %v304 = vpop.f32.mrb[0].mxu0
    %v305 = vpop.f32.mrb[0].mxu0
    %v306 = vadd.f32 %v118, %v305
    %v307 = vpop.f32.mrb[0].mxu0
    %308 = vmatprep.mubr.bf16.mxu0 0
    %309 = vmatmul.mubr.bf16.gmra.mrb[0].mxu0 %v169
    %v310 = vpop.f32.mrb[0].mxu0
    %v311 = vadd.f32 %v118, %v310
    %v312 = vpop.f32.mrb[0].mxu0
    %v313 = vpop.f32.mrb[0].mxu0
    %v314 = vadd.f32 %v118, %v313
    %v315 = vpop.f32.mrb[0].mxu0
    %316 = vmatprep.mubr.bf16.mxu0 0
    %317 = vmatmul.mubr.bf16.gmra.mrb[0].mxu0 %v172
    %v318 = vpop.f32.mrb[0].mxu0
    %v319 = vadd.f32 %v118, %v318
    %v320 = vpop.f32.mrb[0].mxu0
    %v321 = vpop.f32.mrb[0].mxu0
    %v322 = vadd.f32 %v118, %v321
    %v323 = vpop.f32.mrb[0].mxu0
    %324 = vmatprep.mubr.bf16.mxu0 0
    %325 = vmatmul.mubr.bf16.gmra.mrb[0].mxu0 %v175
    %v326 = vpop.f32.mrb[0].mxu0
    %v327 = vadd.f32 %v118, %v326
    %v328 = vpop.f32.mrb[0].mxu0
    %v329 = vpop.f32.mrb[0].mxu0
    %v330 = vadd.f32 %v118, %v329
    %v331 = vpop.f32.mrb[0].mxu0
    %332 = vmatprep.mubr.bf16.mxu0 0
    %333 = vmatmul.mubr.bf16.gmra.mrb[0].mxu0 %v178
    %v334 = vpop.f32.mrb[0].mxu0
    %v335 = vadd.f32 %v118, %v334
    %v336 = vpop.f32.mrb[0].mxu0
    %v337 = vpop.f32.mrb[0].mxu0
    %v338 = vadd.f32 %v118, %v337
    %v339 = vpop.f32.mrb[0].mxu0
    %340 = vdwg.mxu0
    %v341 = vmul.f32 %v215, 0.2
    %v342 = vmul.f32 %v218, 0.2
    %v343 = vmul.f32 %v223, 0.2
    %v344 = vmul.f32 %v226, 0.2
    %v345 = vmul.f32 %v231, 0.2
    %v346 = vmul.f32 %v234, 0.2
    %v347 = vmul.f32 %v239, 0.2
    %v348 = vmul.f32 %v242, 0.2
    %v349 = vmul.f32 %v247, 0.2
    %v350 = vmul.f32 %v250, 0.2
    %v351 = vmul.f32 %v255, 0.2
    %v352 = vmul.f32 %v258, 0.2
    %v353 = vmul.f32 %v263, 0.2
    %v354 = vmul.f32 %v266, 0.2
    %v355 = vmul.f32 %v271, 0.2
    %v356 = vmul.f32 %v274, 0.2
    %v357 = vmul.f32 %v279, 0.2
    %v358 = vmul.f32 %v282, 0.2
    %v359 = vmul.f32 %v287, 0.2
    %v360 = vmul.f32 %v290, 0.2
    %v361 = vmul.f32 %v295, 0.2
    %v362 = vmul.f32 %v298, 0.2
    %v363 = vmul.f32 %v303, 0.2
    %v364 = vmul.f32 %v306, 0.2
    %v365 = vmul.f32 %v311, 0.2
    %v366 = vmul.f32 %v314, 0.2
    %v367 = vmul.f32 %v319, 0.2
    %v368 = vmul.f32 %v322, 0.2
    %v369 = vmul.f32 %v327, 0.2
    %v370 = vmul.f32 %v330, 0.2
    %v371 = vmul.f32 %v335, 0.2
    %v372 = vmul.f32 %v338, 0.2
    %v373 = vmax.f32 %v215, %v341
    %v374 = vmax.f32 %v218, %v342
    %v375 = vmax.f32 %v223, %v343
    %v376 = vmax.f32 %v226, %v344
    %v377 = vmax.f32 %v231, %v345
    %v378 = vmax.f32 %v234, %v346
    %v379 = vmax.f32 %v239, %v347
    %v380 = vmax.f32 %v242, %v348
    %v381 = vmax.f32 %v247, %v349
    %v382 = vmax.f32 %v250, %v350
    %v383 = vmax.f32 %v255, %v351
    %v384 = vmax.f32 %v258, %v352
    %v385 = vmax.f32 %v263, %v353
    %v386 = vmax.f32 %v266, %v354
    %v387 = vmax.f32 %v271, %v355
    %v388 = vmax.f32 %v274, %v356
    %v389 = vmax.f32 %v279, %v357
    %v390 = vmax.f32 %v282, %v358
    %v391 = vmax.f32 %v287, %v359
    %v392 = vmax.f32 %v290, %v360
    %v393 = vmax.f32 %v295, %v361
    %v394 = vmax.f32 %v298, %v362
    %v395 = vmax.f32 %v303, %v363
    %v396 = vmax.f32 %v306, %v364
    %v397 = vmax.f32 %v311, %v365
    %v398 = vmax.f32 %v314, %v366
    %v399 = vmax.f32 %v319, %v367
    %v400 = vmax.f32 %v322, %v368
    %v401 = vmax.f32 %v327, %v369
    %v402 = vmax.f32 %v330, %v370
    %v403 = vmax.f32 %v335, %v371
    %v404 = vmax.f32 %v338, %v372
    %v405 = vadd.f32 %v373, %v374
    %v406 = vadd.f32 %v405, %v375
    %v407 = vadd.f32 %v406, %v376
    %v408 = vadd.f32 %v407, %v377
    %v409 = vadd.f32 %v408, %v378
    %v410 = vadd.f32 %v409, %v379
    %v411 = vadd.f32 %v410, %v380
    %v412 = vadd.f32 %v411, %v381
    %v413 = vadd.f32 %v412, %v382
    %v414 = vadd.f32 %v413, %v383
    %v415 = vadd.f32 %v414, %v384
    %v416 = vadd.f32 %v415, %v385
    %v417 = vadd.f32 %v416, %v386
    %v418 = vadd.f32 %v417, %v387
    %v419 = vadd.f32 %v418, %v388
    %v420 = vadd.f32 %v419, %v389
    %v421 = vadd.f32 %v420, %v390
    %v422 = vadd.f32 %v421, %v391
    %v423 = vadd.f32 %v422, %v392
    %v424 = vadd.f32 %v423, %v393
    %v425 = vadd.f32 %v424, %v394
    %v426 = vadd.f32 %v425, %v395
    %v427 = vadd.f32 %v426, %v396
    %v428 = vadd.f32 %v427, %v397
    %v429 = vadd.f32 %v428, %v398
    %v430 = vadd.f32 %v429, %v399
    %v431 = vadd.f32 %v430, %v400
    %v432 = vadd.f32 %v431, %v401
    %v433 = vadd.f32 %v432, %v402
    %v434 = vadd.f32 %v433, %v403
    %v435 = vadd.f32 %v434, %v404
    %v436 = vrot.slane %v435, 4
    %v437 = vadd.f32 %v435, %v436
    %v438 = vrot.slane %v437, 2
    %v439 = vadd.f32 %v437, %v438
    %v440 = vrot.slane %v439, 1
    %v441 = vadd.f32 %v439, %v440
    %v442 = vmul.f32 %v441, 0.00390625
    %v443 = vsub.f32 %v373, %v442
    %v444 = vsub.f32 %v374, %v442
    %v445 = vsub.f32 %v375, %v442
    %v446 = vsub.f32 %v376, %v442
    %v447 = vsub.f32 %v377, %v442
    %v448 = vsub.f32 %v378, %v442
    %v449 = vsub.f32 %v379, %v442
    %v450 = vsub.f32 %v380, %v442
    %v451 = vsub.f32 %v381, %v442
    %v452 = vsub.f32 %v382, %v442
    %v453 = vsub.f32 %v383, %v442
    %v454 = vsub.f32 %v384, %v442
    %v455 = vsub.f32 %v385, %v442
    %v456 = vsub.f32 %v386, %v442
    %v457 = vsub.f32 %v387, %v442
    %v458 = vsub.f32 %v388, %v442
    %v459 = vsub.f32 %v389, %v442
    %v460 = vsub.f32 %v390, %v442
    %v461 = vsub.f32 %v391, %v442
    %v462 = vsub.f32 %v392, %v442
    %v463 = vsub.f32 %v393, %v442
    %v464 = vsub.f32 %v394, %v442
    %v465 = vsub.f32 %v395, %v442
    %v466 = vsub.f32 %v396, %v442
    %v467 = vsub.f32 %v397, %v442
    %v468 = vsub.f32 %v398, %v442
    %v469 = vsub.f32 %v399, %v442
    %v470 = vsub.f32 %v400, %v442
    %v471 = vsub.f32 %v401, %v442
    %v472 = vsub.f32 %v402, %v442
    %v473 = vsub.f32 %v403, %v442
    %v474 = vsub.f32 %v404, %v442
    %v475 = vmul.f32 %v443, %v443
    %v476 = vmul.f32 %v444, %v444
    %v477 = vmul.f32 %v445, %v445
    %v478 = vmul.f32 %v446, %v446
    %v479 = vmul.f32 %v447, %v447
    %v480 = vmul.f32 %v448, %v448
    %v481 = vmul.f32 %v449, %v449
    %v482 = vmul.f32 %v450, %v450
    %v483 = vmul.f32 %v451, %v451
    %v484 = vmul.f32 %v452, %v452
    %v485 = vmul.f32 %v453, %v453
    %v486 = vmul.f32 %v454, %v454
    %v487 = vmul.f32 %v455, %v455
    %v488 = vmul.f32 %v456, %v456
    %v489 = vmul.f32 %v457, %v457
    %v490 = vmul.f32 %v458, %v458
    %v491 = vmul.f32 %v459, %v459
    %v492 = vmul.f32 %v460, %v460
    %v493 = vmul.f32 %v461, %v461
    %v494 = vmul.f32 %v462, %v462
    %v495 = vmul.f32 %v463, %v463
    %v496 = vmul.f32 %v464, %v464
    %v497 = vmul.f32 %v465, %v465
    %v498 = vmul.f32 %v466, %v466
    %v499 = vmul.f32 %v467, %v467
    %v500 = vmul.f32 %v468, %v468
    %v501 = vmul.f32 %v469, %v469
    %v502 = vmul.f32 %v470, %v470
    %v503 = vmul.f32 %v471, %v471
    %v504 = vmul.f32 %v472, %v472
    %v505 = vmul.f32 %v473, %v473
    %v506 = vmul.f32 %v474, %v474
    %v507 = vadd.f32 %v475, %v476
    %v508 = vadd.f32 %v507, %v477
    %v509 = vadd.f32 %v508, %v478
    %v510 = vadd.f32 %v509, %v479
    %v511 = vadd.f32 %v510, %v480
    %v512 = vadd.f32 %v511, %v481
    %v513 = vadd.f32 %v512, %v482
    %v514 = vadd.f32 %v513, %v483
    %v515 = vadd.f32 %v514, %v484
    %v516 = vadd.f32 %v515, %v485
    %v517 = vadd.f32 %v516, %v486
    %v518 = vadd.f32 %v517, %v487
    %v519 = vadd.f32 %v518, %v488
    %v520 = vadd.f32 %v519, %v489
    %v521 = vadd.f32 %v520, %v490
    %v522 = vadd.f32 %v521, %v491
    %v523 = vadd.f32 %v522, %v492
    %v524 = vadd.f32 %v523, %v493
    %v525 = vadd.f32 %v524, %v494
    %v526 = vadd.f32 %v525, %v495
    %v527 = vadd.f32 %v526, %v496
    %v528 = vadd.f32 %v527, %v497
    %v529 = vadd.f32 %v528, %v498
    %v530 = vadd.f32 %v529, %v499
    %v531 = vadd.f32 %v530, %v500
    %v532 = vadd.f32 %v531, %v501
    %v533 = vadd.f32 %v532, %v502
    %v534 = vadd.f32 %v533, %v503
    %v535 = vadd.f32 %v534, %v504
    %v536 = vadd.f32 %v535, %v505
    %v537 = vadd.f32 %v536, %v506
    %v538 = vrot.slane %v537, 4
    %v539 = vadd.f32 %v537, %v538
    %v540 = vrot.slane %v539, 2
    %v541 = vadd.f32 %v539, %v540
    %v542 = vrot.slane %v541, 1
    %v543 = vadd.f32 %v541, %v542
    %v544 = vmul.f32 %v543, 0.00390625
    %v545 = vadd.f32 %v544, 1e-05
    %v546 = vrsqrt.pop %v545
    %v547 = vmul.f32 %v94, %v546
    %v548 = vlaneseq
    %v549 = vshrl.u32 %v548, 7
    %v550 = vsub.s32 1, %v549
    %v551 = vrot.slane %v547, %v550
    %v552 = vmul.f32 %v443, %v551
    %v553 = vmul.f32 %v444, %v551
    %v554 = vmul.f32 %v445, %v551
    %v555 = vmul.f32 %v446, %v551
    %v556 = vmul.f32 %v447, %v551
    %v557 = vmul.f32 %v448, %v551
    %v558 = vmul.f32 %v449, %v551
    %v559 = vmul.f32 %v450, %v551
    %v560 = vmul.f32 %v451, %v551
    %v561 = vmul.f32 %v452, %v551
    %v562 = vmul.f32 %v453, %v551
    %v563 = vmul.f32 %v454, %v551
    %v564 = vmul.f32 %v455, %v551
    %v565 = vmul.f32 %v456, %v551
    %v566 = vmul.f32 %v457, %v551
    %v567 = vmul.f32 %v458, %v551
    %v568 = vmul.f32 %v459, %v551
    %v569 = vmul.f32 %v460, %v551
    %v570 = vmul.f32 %v461, %v551
    %v571 = vmul.f32 %v462, %v551
    %v572 = vmul.f32 %v463, %v551
    %v573 = vmul.f32 %v464, %v551
    %v574 = vmul.f32 %v465, %v551
    %v575 = vmul.f32 %v466, %v551
    %v576 = vmul.f32 %v467, %v551
    %v577 = vmul.f32 %v468, %v551
    %v578 = vmul.f32 %v469, %v551
    %v579 = vmul.f32 %v470, %v551
    %v580 = vmul.f32 %v471, %v551
    %v581 = vmul.f32 %v472, %v551
    %v582 = vmul.f32 %v473, %v551
    %v583 = vmul.f32 %v474, %v551
    %v584 = vlaneseq
    %v585 = vshrl.u32 %v584, 7
    %v586 = vsub.s32 2, %v585
    %v587 = vrot.slane %v94, %v586
    %v588 = vadd.f32 %v552, %v587
    %v589 = vadd.f32 %v553, %v587
    %v590 = vadd.f32 %v554, %v587
    %v591 = vadd.f32 %v555, %v587
    %v592 = vadd.f32 %v556, %v587
    %v593 = vadd.f32 %v557, %v587
    %v594 = vadd.f32 %v558, %v587
    %v595 = vadd.f32 %v559, %v587
    %v596 = vadd.f32 %v560, %v587
    %v597 = vadd.f32 %v561, %v587
    %v598 = vadd.f32 %v562, %v587
    %v599 = vadd.f32 %v563, %v587
    %v600 = vadd.f32 %v564, %v587
    %v601 = vadd.f32 %v565, %v587
    %v602 = vadd.f32 %v566, %v587
    %v603 = vadd.f32 %v567, %v587
    %v604 = vadd.f32 %v568, %v587
    %v605 = vadd.f32 %v569, %v587
    %v606 = vadd.f32 %v570, %v587
    %v607 = vadd.f32 %v571, %v587
    %v608 = vadd.f32 %v572, %v587
    %v609 = vadd.f32 %v573, %v587
    %v610 = vadd.f32 %v574, %v587
    %v611 = vadd.f32 %v575, %v587
    %v612 = vadd.f32 %v576, %v587
    %v613 = vadd.f32 %v577, %v587
    %v614 = vadd.f32 %v578, %v587
    %v615 = vadd.f32 %v579, %v587
    %v616 = vadd.f32 %v580, %v587
    %v617 = vadd.f32 %v581, %v587
    %v618 = vadd.f32 %v582, %v587
    %v619 = vadd.f32 %v583, %v587
    %v620 = vld [vmem:[%s4] sm:$0x77]
    %v621 = vpack.c.bf16 %v589, %v588
    %v622 = vpack.c.bf16 %v591, %v590
    %v623 = vpack.c.bf16 %v593, %v592
    %v624 = vpack.c.bf16 %v595, %v594
    %v625 = vpack.c.bf16 %v597, %v596
    %v626 = vpack.c.bf16 %v599, %v598
    %v627 = vpack.c.bf16 %v601, %v600
    %v628 = vpack.c.bf16 %v603, %v602
    %v629 = vpack.c.bf16 %v605, %v604
    %v630 = vpack.c.bf16 %v607, %v606
    %v631 = vpack.c.bf16 %v609, %v608
    %v632 = vpack.c.bf16 %v611, %v610
    %v633 = vpack.c.bf16 %v613, %v612
    %v634 = vpack.c.bf16 %v615, %v614
    %v635 = vpack.c.bf16 %v617, %v616
    %v636 = vpack.c.bf16 %v619, %v618
    %v637 = vld [vmem:[#allocation2] sm:$0xff]
    %v638 = vld [vmem:[#allocation2 + $0x8] sm:$0xff]
    %v639 = vld [vmem:[#allocation2 + $0x10] sm:$0xff]
    %v640 = vld [vmem:[#allocation2 + $0x18] sm:$0xff]
    %v641 = vld [vmem:[#allocation2 + $0x20] sm:$0xff]
    %v642 = vld [vmem:[#allocation2 + $0x28] sm:$0xff]
    %v643 = vld [vmem:[#allocation2 + $0x30] sm:$0xff]
    %v644 = vld [vmem:[#allocation2 + $0x38] sm:$0xff]
    %v645 = vld [vmem:[#allocation2 + $0x40] sm:$0xff]
    %v646 = vld [vmem:[#allocation2 + $0x48] sm:$0xff]
    %v647 = vld [vmem:[#allocation2 + $0x50] sm:$0xff]
    %v648 = vld [vmem:[#allocation2 + $0x58] sm:$0xff]
    %v649 = vld [vmem:[#allocation2 + $0x60] sm:$0xff]
    %v650 = vld [vmem:[#allocation2 + $0x68] sm:$0xff]
    %v651 = vld [vmem:[#allocation2 + $0x70] sm:$0xff]
    %v652 = vld [vmem:[#allocation2 + $0x78] sm:$0xff]
    %v654 = vlaneseq
    %v655 = vshrl.u32 %v654, 7
    %v656 = vsub.s32 0, %v655
    %v657 = vrot.slane %v620, %v656
    %v658 = vlaneseq
    %v659 = vshrl.u32 %v658, 7
    %v660 = vsub.s32 4, %v659
    %v661 = vrot.slane %v620, %v660
    %v664 = vlaneseq
    %v665 = vshrl.u32 %v664, 7
    %v666 = vsub.s32 0, %v665
    %v667 = vrot.slane %v657, %v666
    %v668 = vlaneseq
    %v669 = vshrl.u32 %v668, 7
    %v670 = vsub.s32 0, %v669
    %v671 = vrot.slane %v661, %v670
    %v688 = vunpack.c.l.b16 %v637
    %v689 = vunpack.c.h.b16 %v637
    %v690 = vunpack.c.l.b16 %v638
    %v691 = vunpack.c.h.b16 %v638
    %v692 = vunpack.c.l.b16 %v639
    %v693 = vunpack.c.h.b16 %v639
    %v694 = vunpack.c.l.b16 %v640
    %v695 = vunpack.c.h.b16 %v640
    %v696 = vunpack.c.l.b16 %v641
    %v697 = vunpack.c.h.b16 %v641
    %v698 = vunpack.c.l.b16 %v642
    %v699 = vunpack.c.h.b16 %v642
    %v700 = vunpack.c.l.b16 %v643
    %v701 = vunpack.c.h.b16 %v643
    %v702 = vunpack.c.l.b16 %v644
    %v703 = vunpack.c.h.b16 %v644
    %v704 = vunpack.c.l.b16 %v645
    %v705 = vunpack.c.h.b16 %v645
    %v706 = vunpack.c.l.b16 %v646
    %v707 = vunpack.c.h.b16 %v646
    %v708 = vunpack.c.l.b16 %v647
    %v709 = vunpack.c.h.b16 %v647
    %v710 = vunpack.c.l.b16 %v648
    %v711 = vunpack.c.h.b16 %v648
    %v712 = vunpack.c.l.b16 %v649
    %v713 = vunpack.c.h.b16 %v649
    %v714 = vunpack.c.l.b16 %v650
    %v715 = vunpack.c.h.b16 %v650
    %v716 = vunpack.c.l.b16 %v651
    %v717 = vunpack.c.h.b16 %v651
    %v718 = vunpack.c.l.b16 %v652
    %v719 = vunpack.c.h.b16 %v652
    %v720 = vpack.c.b16 %v690, %v688
    %v721 = vpack.c.b16 %v691, %v689
    %v722 = vpack.c.b16 %v694, %v692
    %v723 = vpack.c.b16 %v695, %v693
    %v724 = vpack.c.b16 %v698, %v696
    %v725 = vpack.c.b16 %v699, %v697
    %v726 = vpack.c.b16 %v702, %v700
    %v727 = vpack.c.b16 %v703, %v701
    %v728 = vpack.c.b16 %v706, %v704
    %v729 = vpack.c.b16 %v707, %v705
    %v730 = vpack.c.b16 %v710, %v708
    %v731 = vpack.c.b16 %v711, %v709
    %v732 = vpack.c.b16 %v714, %v712
    %v733 = vpack.c.b16 %v715, %v713
    %v734 = vpack.c.b16 %v718, %v716
    %v735 = vpack.c.b16 %v719, %v717
    %752 = vmatprep.subr.bf16.mxu0 %v721
    %753 = vmatpush1.bf16.msra.mxu0 %v720
    %754 = vmatprep.subr.bf16.mxu0 %v723
    %755 = vmatpush1.bf16.msra.mxu0 %v722
    %756 = vmatprep.subr.bf16.mxu0 %v725
    %757 = vmatpush1.bf16.msra.mxu0 %v724
    %758 = vmatprep.subr.bf16.mxu0 %v727
    %759 = vmatpush1.bf16.msra.mxu0 %v726
    %760 = vmatprep.subr.bf16.mxu0 %v729
    %761 = vmatpush1.bf16.msra.mxu0 %v728
    %762 = vmatprep.subr.bf16.mxu0 %v731
    %763 = vmatpush1.bf16.msra.mxu0 %v730
    %764 = vmatprep.subr.bf16.mxu0 %v733
    %765 = vmatpush1.bf16.msra.mxu0 %v732
    %766 = vmatprep.subr.bf16.mxu0 %v735
    %767 = vmatpush1.bf16.msra.mxu0 %v734
    %768 = vmatprep.subr.bf16.mxu0 0
    %769 = vmatpush1.bf16.msra.mxu0 0
    %770 = vmatprep.subr.bf16.mxu0 0
    %771 = vmatpush1.bf16.msra.mxu0 0
    %772 = vmatprep.subr.bf16.mxu0 0
    %773 = vmatpush1.bf16.msra.mxu0 0
    %774 = vmatprep.subr.bf16.mxu0 0
    %775 = vmatpush1.bf16.msra.mxu0 0
    %776 = vmatprep.subr.bf16.mxu0 0
    %777 = vmatpush1.bf16.msra.mxu0 0
    %778 = vmatprep.subr.bf16.mxu0 0
    %779 = vmatpush1.bf16.msra.mxu0 0
    %780 = vmatprep.subr.bf16.mxu0 0
    %781 = vmatpush1.bf16.msra.mxu0 0
    %782 = vmatprep.subr.bf16.mxu0 0
    %783 = vmatpush1.bf16.msra.mxu0 0
    %784 = vmatprep.mubr.bf16.mxu0 0
    %785 = vmatmul.mubr.bf16.gmra.mrb[0].mxu0 %v621
    %v786 = vpop.f32.mrb[0].mxu0
    %v787 = vadd.f32 %v667, %v786
    %v788 = vpop.f32.mrb[0].mxu0
    %v789 = vadd.f32 %v671, %v788
    %v790 = vpop.f32.mrb[0].mxu0
    %v791 = vadd.f32 %v667, %v790
    %v792 = vpop.f32.mrb[0].mxu0
    %v793 = vadd.f32 %v671, %v792
    %794 = vmatprep.mubr.bf16.mxu0 0
    %795 = vmatmul.mubr.bf16.gmra.mrb[0].mxu0 %v622
    %v796 = vpop.f32.mrb[0].mxu0
    %v797 = vadd.f32 %v667, %v796
    %v798 = vpop.f32.mrb[0].mxu0
    %v799 = vadd.f32 %v671, %v798
    %v800 = vpop.f32.mrb[0].mxu0
    %v801 = vadd.f32 %v667, %v800
    %v802 = vpop.f32.mrb[0].mxu0
    %v803 = vadd.f32 %v671, %v802
    %804 = vmatprep.mubr.bf16.mxu0 0
    %805 = vmatmul.mubr.bf16.gmra.mrb[0].mxu0 %v623
    %v806 = vpop.f32.mrb[0].mxu0
    %v807 = vadd.f32 %v667, %v806
    %v808 = vpop.f32.mrb[0].mxu0
    %v809 = vadd.f32 %v671, %v808
    %v810 = vpop.f32.mrb[0].mxu0
    %v811 = vadd.f32 %v667, %v810
    %v812 = vpop.f32.mrb[0].mxu0
    %v813 = vadd.f32 %v671, %v812
    %814 = vmatprep.mubr.bf16.mxu0 0
    %815 = vmatmul.mubr.bf16.gmra.mrb[0].mxu0 %v624
    %v816 = vpop.f32.mrb[0].mxu0
    %v817 = vadd.f32 %v667, %v816
    %v818 = vpop.f32.mrb[0].mxu0
    %v819 = vadd.f32 %v671, %v818
    %v820 = vpop.f32.mrb[0].mxu0
    %v821 = vadd.f32 %v667, %v820
    %v822 = vpop.f32.mrb[0].mxu0
    %v823 = vadd.f32 %v671, %v822
    %824 = vmatprep.mubr.bf16.mxu0 0
    %825 = vmatmul.mubr.bf16.gmra.mrb[0].mxu0 %v625
    %v826 = vpop.f32.mrb[0].mxu0
    %v827 = vadd.f32 %v667, %v826
    %v828 = vpop.f32.mrb[0].mxu0
    %v829 = vadd.f32 %v671, %v828
    %v830 = vpop.f32.mrb[0].mxu0
    %v831 = vadd.f32 %v667, %v830
    %v832 = vpop.f32.mrb[0].mxu0
    %v833 = vadd.f32 %v671, %v832
    %834 = vmatprep.mubr.bf16.mxu0 0
    %835 = vmatmul.mubr.bf16.gmra.mrb[0].mxu0 %v626
    %v836 = vpop.f32.mrb[0].mxu0
    %v837 = vadd.f32 %v667, %v836
    %v838 = vpop.f32.mrb[0].mxu0
    %v839 = vadd.f32 %v671, %v838
    %v840 = vpop.f32.mrb[0].mxu0
    %v841 = vadd.f32 %v667, %v840
    %v842 = vpop.f32.mrb[0].mxu0
    %v843 = vadd.f32 %v671, %v842
    %844 = vmatprep.mubr.bf16.mxu0 0
    %845 = vmatmul.mubr.bf16.gmra.mrb[0].mxu0 %v627
    %v846 = vpop.f32.mrb[0].mxu0
    %v847 = vadd.f32 %v667, %v846
    %v848 = vpop.f32.mrb[0].mxu0
    %v849 = vadd.f32 %v671, %v848
    %v850 = vpop.f32.mrb[0].mxu0
    %v851 = vadd.f32 %v667, %v850
    %v852 = vpop.f32.mrb[0].mxu0
    %v853 = vadd.f32 %v671, %v852
    %854 = vmatprep.mubr.bf16.mxu0 0
    %855 = vmatmul.mubr.bf16.gmra.mrb[0].mxu0 %v628
    %v856 = vpop.f32.mrb[0].mxu0
    %v857 = vadd.f32 %v667, %v856
    %v858 = vpop.f32.mrb[0].mxu0
    %v859 = vadd.f32 %v671, %v858
    %v860 = vpop.f32.mrb[0].mxu0
    %v861 = vadd.f32 %v667, %v860
    %v862 = vpop.f32.mrb[0].mxu0
    %v863 = vadd.f32 %v671, %v862
    %864 = vmatprep.mubr.bf16.mxu0 0
    %865 = vmatmul.mubr.bf16.gmra.mrb[0].mxu0 %v629
    %v866 = vpop.f32.mrb[0].mxu0
    %v867 = vadd.f32 %v667, %v866
    %v868 = vpop.f32.mrb[0].mxu0
    %v869 = vadd.f32 %v671, %v868
    %v870 = vpop.f32.mrb[0].mxu0
    %v871 = vadd.f32 %v667, %v870
    %v872 = vpop.f32.mrb[0].mxu0
    %v873 = vadd.f32 %v671, %v872
    %874 = vmatprep.mubr.bf16.mxu0 0
    %875 = vmatmul.mubr.bf16.gmra.mrb[0].mxu0 %v630
    %v876 = vpop.f32.mrb[0].mxu0
    %v877 = vadd.f32 %v667, %v876
    %v878 = vpop.f32.mrb[0].mxu0
    %v879 = vadd.f32 %v671, %v878
    %v880 = vpop.f32.mrb[0].mxu0
    %v881 = vadd.f32 %v667, %v880
    %v882 = vpop.f32.mrb[0].mxu0
    %v883 = vadd.f32 %v671, %v882
    %884 = vmatprep.mubr.bf16.mxu0 0
    %885 = vmatmul.mubr.bf16.gmra.mrb[0].mxu0 %v631
    %v886 = vpop.f32.mrb[0].mxu0
    %v887 = vadd.f32 %v667, %v886
    %v888 = vpop.f32.mrb[0].mxu0
    %v889 = vadd.f32 %v671, %v888
    %v890 = vpop.f32.mrb[0].mxu0
    %v891 = vadd.f32 %v667, %v890
    %v892 = vpop.f32.mrb[0].mxu0
    %v893 = vadd.f32 %v671, %v892
    %894 = vmatprep.mubr.bf16.mxu0 0
    %895 = vmatmul.mubr.bf16.gmra.mrb[0].mxu0 %v632
    %v896 = vpop.f32.mrb[0].mxu0
    %v897 = vadd.f32 %v667, %v896
    %v898 = vpop.f32.mrb[0].mxu0
    %v899 = vadd.f32 %v671, %v898
    %v900 = vpop.f32.mrb[0].mxu0
    %v901 = vadd.f32 %v667, %v900
    %v902 = vpop.f32.mrb[0].mxu0
    %v903 = vadd.f32 %v671, %v902
    %904 = vmatprep.mubr.bf16.mxu0 0
    %905 = vmatmul.mubr.bf16.gmra.mrb[0].mxu0 %v633
    %v906 = vpop.f32.mrb[0].mxu0
    %v907 = vadd.f32 %v667, %v906
    %v908 = vpop.f32.mrb[0].mxu0
    %v909 = vadd.f32 %v671, %v908
    %v910 = vpop.f32.mrb[0].mxu0
    %v911 = vadd.f32 %v667, %v910
    %v912 = vpop.f32.mrb[0].mxu0
    %v913 = vadd.f32 %v671, %v912
    %914 = vmatprep.mubr.bf16.mxu0 0
    %915 = vmatmul.mubr.bf16.gmra.mrb[0].mxu0 %v634
    %v916 = vpop.f32.mrb[0].mxu0
    %v917 = vadd.f32 %v667, %v916
    %v918 = vpop.f32.mrb[0].mxu0
    %v919 = vadd.f32 %v671, %v918
    %v920 = vpop.f32.mrb[0].mxu0
    %v921 = vadd.f32 %v667, %v920
    %v922 = vpop.f32.mrb[0].mxu0
    %v923 = vadd.f32 %v671, %v922
    %924 = vmatprep.mubr.bf16.mxu0 0
    %925 = vmatmul.mubr.bf16.gmra.mrb[0].mxu0 %v635
    %v926 = vpop.f32.mrb[0].mxu0
    %v927 = vadd.f32 %v667, %v926
    %v928 = vpop.f32.mrb[0].mxu0
    %v929 = vadd.f32 %v671, %v928
    %v930 = vpop.f32.mrb[0].mxu0
    %v931 = vadd.f32 %v667, %v930
    %v932 = vpop.f32.mrb[0].mxu0
    %v933 = vadd.f32 %v671, %v932
    %934 = vmatprep.mubr.bf16.mxu0 0
    %935 = vmatmul.mubr.bf16.gmra.mrb[0].mxu0 %v636
    %v936 = vpop.f32.mrb[0].mxu0
    %v937 = vadd.f32 %v667, %v936
    %v938 = vpop.f32.mrb[0].mxu0
    %v939 = vadd.f32 %v671, %v938
    %v940 = vpop.f32.mrb[0].mxu0
    %v941 = vadd.f32 %v667, %v940
    %v942 = vpop.f32.mrb[0].mxu0
    %v943 = vadd.f32 %v671, %v942
    %944 = vdwg.mxu0
    %v945 = vmul.f32 %v787, 0.2
    %v946 = vmul.f32 %v789, 0.2
    %v947 = vmul.f32 %v791, 0.2
    %v948 = vmul.f32 %v793, 0.2
    %v949 = vmul.f32 %v797, 0.2
    %v950 = vmul.f32 %v799, 0.2
    %v951 = vmul.f32 %v801, 0.2
    %v952 = vmul.f32 %v803, 0.2
    %v953 = vmul.f32 %v807, 0.2
    %v954 = vmul.f32 %v809, 0.2
    %v955 = vmul.f32 %v811, 0.2
    %v956 = vmul.f32 %v813, 0.2
    %v957 = vmul.f32 %v817, 0.2
    %v958 = vmul.f32 %v819, 0.2
    %v959 = vmul.f32 %v821, 0.2
    %v960 = vmul.f32 %v823, 0.2
    %v961 = vmul.f32 %v827, 0.2
    %v962 = vmul.f32 %v829, 0.2
    %v963 = vmul.f32 %v831, 0.2
    %v964 = vmul.f32 %v833, 0.2
    %v965 = vmul.f32 %v837, 0.2
    %v966 = vmul.f32 %v839, 0.2
    %v967 = vmul.f32 %v841, 0.2
    %v968 = vmul.f32 %v843, 0.2
    %v969 = vmul.f32 %v847, 0.2
    %v970 = vmul.f32 %v849, 0.2
    %v971 = vmul.f32 %v851, 0.2
    %v972 = vmul.f32 %v853, 0.2
    %v973 = vmul.f32 %v857, 0.2
    %v974 = vmul.f32 %v859, 0.2
    %v975 = vmul.f32 %v861, 0.2
    %v976 = vmul.f32 %v863, 0.2
    %v977 = vmul.f32 %v867, 0.2
    %v978 = vmul.f32 %v869, 0.2
    %v979 = vmul.f32 %v871, 0.2
    %v980 = vmul.f32 %v873, 0.2
    %v981 = vmul.f32 %v877, 0.2
    %v982 = vmul.f32 %v879, 0.2
    %v983 = vmul.f32 %v881, 0.2
    %v984 = vmul.f32 %v883, 0.2
    %v985 = vmul.f32 %v887, 0.2
    %v986 = vmul.f32 %v889, 0.2
    %v987 = vmul.f32 %v891, 0.2
    %v988 = vmul.f32 %v893, 0.2
    %v989 = vmul.f32 %v897, 0.2
    %v990 = vmul.f32 %v899, 0.2
    %v991 = vmul.f32 %v901, 0.2
    %v992 = vmul.f32 %v903, 0.2
    %v993 = vmul.f32 %v907, 0.2
    %v994 = vmul.f32 %v909, 0.2
    %v995 = vmul.f32 %v911, 0.2
    %v996 = vmul.f32 %v913, 0.2
    %v997 = vmul.f32 %v917, 0.2
    %v998 = vmul.f32 %v919, 0.2
    %v999 = vmul.f32 %v921, 0.2
    %v1000 = vmul.f32 %v923, 0.2
    %v1001 = vmul.f32 %v927, 0.2
    %v1002 = vmul.f32 %v929, 0.2
    %v1003 = vmul.f32 %v931, 0.2
    %v1004 = vmul.f32 %v933, 0.2
    %v1005 = vmul.f32 %v937, 0.2
    %v1006 = vmul.f32 %v939, 0.2
    %v1007 = vmul.f32 %v941, 0.2
    %v1008 = vmul.f32 %v943, 0.2
    %v1009 = vmax.f32 %v787, %v945
    %v1010 = vmax.f32 %v789, %v946
    %v1011 = vmax.f32 %v791, %v947
    %v1012 = vmax.f32 %v793, %v948
    %v1013 = vmax.f32 %v797, %v949
    %v1014 = vmax.f32 %v799, %v950
    %v1015 = vmax.f32 %v801, %v951
    %v1016 = vmax.f32 %v803, %v952
    %v1017 = vmax.f32 %v807, %v953
    %v1018 = vmax.f32 %v809, %v954
    %v1019 = vmax.f32 %v811, %v955
    %v1020 = vmax.f32 %v813, %v956
    %v1021 = vmax.f32 %v817, %v957
    %v1022 = vmax.f32 %v819, %v958
    %v1023 = vmax.f32 %v821, %v959
    %v1024 = vmax.f32 %v823, %v960
    %v1025 = vmax.f32 %v827, %v961
    %v1026 = vmax.f32 %v829, %v962
    %v1027 = vmax.f32 %v831, %v963
    %v1028 = vmax.f32 %v833, %v964
    %v1029 = vmax.f32 %v837, %v965
    %v1030 = vmax.f32 %v839, %v966
    %v1031 = vmax.f32 %v841, %v967
    %v1032 = vmax.f32 %v843, %v968
    %v1033 = vmax.f32 %v847, %v969
    %v1034 = vmax.f32 %v849, %v970
    %v1035 = vmax.f32 %v851, %v971
    %v1036 = vmax.f32 %v853, %v972
    %v1037 = vmax.f32 %v857, %v973
    %v1038 = vmax.f32 %v859, %v974
    %v1039 = vmax.f32 %v861, %v975
    %v1040 = vmax.f32 %v863, %v976
    %v1041 = vmax.f32 %v867, %v977
    %v1042 = vmax.f32 %v869, %v978
    %v1043 = vmax.f32 %v871, %v979
    %v1044 = vmax.f32 %v873, %v980
    %v1045 = vmax.f32 %v877, %v981
    %v1046 = vmax.f32 %v879, %v982
    %v1047 = vmax.f32 %v881, %v983
    %v1048 = vmax.f32 %v883, %v984
    %v1049 = vmax.f32 %v887, %v985
    %v1050 = vmax.f32 %v889, %v986
    %v1051 = vmax.f32 %v891, %v987
    %v1052 = vmax.f32 %v893, %v988
    %v1053 = vmax.f32 %v897, %v989
    %v1054 = vmax.f32 %v899, %v990
    %v1055 = vmax.f32 %v901, %v991
    %v1056 = vmax.f32 %v903, %v992
    %v1057 = vmax.f32 %v907, %v993
    %v1058 = vmax.f32 %v909, %v994
    %v1059 = vmax.f32 %v911, %v995
    %v1060 = vmax.f32 %v913, %v996
    %v1061 = vmax.f32 %v917, %v997
    %v1062 = vmax.f32 %v919, %v998
    %v1063 = vmax.f32 %v921, %v999
    %v1064 = vmax.f32 %v923, %v1000
    %v1065 = vmax.f32 %v927, %v1001
    %v1066 = vmax.f32 %v929, %v1002
    %v1067 = vmax.f32 %v931, %v1003
    %v1068 = vmax.f32 %v933, %v1004
    %v1069 = vmax.f32 %v937, %v1005
    %v1070 = vmax.f32 %v939, %v1006
    %v1071 = vmax.f32 %v941, %v1007
    %v1072 = vmax.f32 %v943, %v1008
    %v1073 = vadd.f32 %v1009, %v1011
    %v1074 = vadd.f32 %v1073, %v1013
    %v1075 = vadd.f32 %v1074, %v1015
    %v1076 = vadd.f32 %v1075, %v1017
    %v1077 = vadd.f32 %v1076, %v1019
    %v1078 = vadd.f32 %v1077, %v1021
    %v1079 = vadd.f32 %v1078, %v1023
    %v1080 = vadd.f32 %v1079, %v1025
    %v1081 = vadd.f32 %v1080, %v1027
    %v1082 = vadd.f32 %v1081, %v1029
    %v1083 = vadd.f32 %v1082, %v1031
    %v1084 = vadd.f32 %v1083, %v1033
    %v1085 = vadd.f32 %v1084, %v1035
    %v1086 = vadd.f32 %v1085, %v1037
    %v1087 = vadd.f32 %v1086, %v1039
    %v1088 = vadd.f32 %v1087, %v1041
    %v1089 = vadd.f32 %v1088, %v1043
    %v1090 = vadd.f32 %v1089, %v1045
    %v1091 = vadd.f32 %v1090, %v1047
    %v1092 = vadd.f32 %v1091, %v1049
    %v1093 = vadd.f32 %v1092, %v1051
    %v1094 = vadd.f32 %v1093, %v1053
    %v1095 = vadd.f32 %v1094, %v1055
    %v1096 = vadd.f32 %v1095, %v1057
    %v1097 = vadd.f32 %v1096, %v1059
    %v1098 = vadd.f32 %v1097, %v1061
    %v1099 = vadd.f32 %v1098, %v1063
    %v1100 = vadd.f32 %v1099, %v1065
    %v1101 = vadd.f32 %v1100, %v1067
    %v1102 = vadd.f32 %v1101, %v1069
    %v1103 = vadd.f32 %v1102, %v1071
    %v1104 = vrot.slane %v1103, 4
    %v1105 = vadd.f32 %v1103, %v1104
    %v1106 = vrot.slane %v1105, 2
    %v1107 = vadd.f32 %v1105, %v1106
    %v1108 = vrot.slane %v1107, 1
    %v1109 = vadd.f32 %v1107, %v1108
    %v1110 = vadd.f32 %v1010, %v1012
    %v1111 = vadd.f32 %v1110, %v1014
    %v1112 = vadd.f32 %v1111, %v1016
    %v1113 = vadd.f32 %v1112, %v1018
    %v1114 = vadd.f32 %v1113, %v1020
    %v1115 = vadd.f32 %v1114, %v1022
    %v1116 = vadd.f32 %v1115, %v1024
    %v1117 = vadd.f32 %v1116, %v1026
    %v1118 = vadd.f32 %v1117, %v1028
    %v1119 = vadd.f32 %v1118, %v1030
    %v1120 = vadd.f32 %v1119, %v1032
    %v1121 = vadd.f32 %v1120, %v1034
    %v1122 = vadd.f32 %v1121, %v1036
    %v1123 = vadd.f32 %v1122, %v1038
    %v1124 = vadd.f32 %v1123, %v1040
    %v1125 = vadd.f32 %v1124, %v1042
    %v1126 = vadd.f32 %v1125, %v1044
    %v1127 = vadd.f32 %v1126, %v1046
    %v1128 = vadd.f32 %v1127, %v1048
    %v1129 = vadd.f32 %v1128, %v1050
    %v1130 = vadd.f32 %v1129, %v1052
    %v1131 = vadd.f32 %v1130, %v1054
    %v1132 = vadd.f32 %v1131, %v1056
    %v1133 = vadd.f32 %v1132, %v1058
    %v1134 = vadd.f32 %v1133, %v1060
    %v1135 = vadd.f32 %v1134, %v1062
    %v1136 = vadd.f32 %v1135, %v1064
    %v1137 = vadd.f32 %v1136, %v1066
    %v1138 = vadd.f32 %v1137, %v1068
    %v1139 = vadd.f32 %v1138, %v1070
    %v1140 = vadd.f32 %v1139, %v1072
    %v1141 = vrot.slane %v1140, 4
    %v1142 = vadd.f32 %v1140, %v1141
    %v1143 = vrot.slane %v1142, 2
    %v1144 = vadd.f32 %v1142, %v1143
    %v1145 = vrot.slane %v1144, 1
    %v1146 = vadd.f32 %v1144, %v1145
    %v1147 = vmul.f32 %v1109, 0.00390625
    %v1148 = vmul.f32 %v1146, 0.00390625
    %v1149 = vsub.f32 %v1009, %v1147
    %v1150 = vsub.f32 %v1010, %v1148
    %v1151 = vsub.f32 %v1011, %v1147
    %v1152 = vsub.f32 %v1012, %v1148
    %v1153 = vsub.f32 %v1013, %v1147
    %v1154 = vsub.f32 %v1014, %v1148
    %v1155 = vsub.f32 %v1015, %v1147
    %v1156 = vsub.f32 %v1016, %v1148
    %v1157 = vsub.f32 %v1017, %v1147
    %v1158 = vsub.f32 %v1018, %v1148
    %v1159 = vsub.f32 %v1019, %v1147
    %v1160 = vsub.f32 %v1020, %v1148
    %v1161 = vsub.f32 %v1021, %v1147
    %v1162 = vsub.f32 %v1022, %v1148
    %v1163 = vsub.f32 %v1023, %v1147
    %v1164 = vsub.f32 %v1024, %v1148
    %v1165 = vsub.f32 %v1025, %v1147
    %v1166 = vsub.f32 %v1026, %v1148
    %v1167 = vsub.f32 %v1027, %v1147
    %v1168 = vsub.f32 %v1028, %v1148
    %v1169 = vsub.f32 %v1029, %v1147
    %v1170 = vsub.f32 %v1030, %v1148
    %v1171 = vsub.f32 %v1031, %v1147
    %v1172 = vsub.f32 %v1032, %v1148
    %v1173 = vsub.f32 %v1033, %v1147
    %v1174 = vsub.f32 %v1034, %v1148
    %v1175 = vsub.f32 %v1035, %v1147
    %v1176 = vsub.f32 %v1036, %v1148
    %v1177 = vsub.f32 %v1037, %v1147
    %v1178 = vsub.f32 %v1038, %v1148
    %v1179 = vsub.f32 %v1039, %v1147
    %v1180 = vsub.f32 %v1040, %v1148
    %v1181 = vsub.f32 %v1041, %v1147
    %v1182 = vsub.f32 %v1042, %v1148
    %v1183 = vsub.f32 %v1043, %v1147
    %v1184 = vsub.f32 %v1044, %v1148
    %v1185 = vsub.f32 %v1045, %v1147
    %v1186 = vsub.f32 %v1046, %v1148
    %v1187 = vsub.f32 %v1047, %v1147
    %v1188 = vsub.f32 %v1048, %v1148
    %v1189 = vsub.f32 %v1049, %v1147
    %v1190 = vsub.f32 %v1050, %v1148
    %v1191 = vsub.f32 %v1051, %v1147
    %v1192 = vsub.f32 %v1052, %v1148
    %v1193 = vsub.f32 %v1053, %v1147
    %v1194 = vsub.f32 %v1054, %v1148
    %v1195 = vsub.f32 %v1055, %v1147
    %v1196 = vsub.f32 %v1056, %v1148
    %v1197 = vsub.f32 %v1057, %v1147
    %v1198 = vsub.f32 %v1058, %v1148
    %v1199 = vsub.f32 %v1059, %v1147
    %v1200 = vsub.f32 %v1060, %v1148
    %v1201 = vsub.f32 %v1061, %v1147
    %v1202 = vsub.f32 %v1062, %v1148
    %v1203 = vsub.f32 %v1063, %v1147
    %v1204 = vsub.f32 %v1064, %v1148
    %v1205 = vsub.f32 %v1065, %v1147
    %v1206 = vsub.f32 %v1066, %v1148
    %v1207 = vsub.f32 %v1067, %v1147
    %v1208 = vsub.f32 %v1068, %v1148
    %v1209 = vsub.f32 %v1069, %v1147
    %v1210 = vsub.f32 %v1070, %v1148
    %v1211 = vsub.f32 %v1071, %v1147
    %v1212 = vsub.f32 %v1072, %v1148
    %v1213 = vmul.f32 %v1149, %v1149
    %v1214 = vmul.f32 %v1150, %v1150
    %v1215 = vmul.f32 %v1151, %v1151
    %v1216 = vmul.f32 %v1152, %v1152
    %v1217 = vmul.f32 %v1153, %v1153
    %v1218 = vmul.f32 %v1154, %v1154
    %v1219 = vmul.f32 %v1155, %v1155
    %v1220 = vmul.f32 %v1156, %v1156
    %v1221 = vmul.f32 %v1157, %v1157
    %v1222 = vmul.f32 %v1158, %v1158
    %v1223 = vmul.f32 %v1159, %v1159
    %v1224 = vmul.f32 %v1160, %v1160
    %v1225 = vmul.f32 %v1161, %v1161
    %v1226 = vmul.f32 %v1162, %v1162
    %v1227 = vmul.f32 %v1163, %v1163
    %v1228 = vmul.f32 %v1164, %v1164
    %v1229 = vmul.f32 %v1165, %v1165
    %v1230 = vmul.f32 %v1166, %v1166
    %v1231 = vmul.f32 %v1167, %v1167
    %v1232 = vmul.f32 %v1168, %v1168
    %v1233 = vmul.f32 %v1169, %v1169
    %v1234 = vmul.f32 %v1170, %v1170
    %v1235 = vmul.f32 %v1171, %v1171
    %v1236 = vmul.f32 %v1172, %v1172
    %v1237 = vmul.f32 %v1173, %v1173
    %v1238 = vmul.f32 %v1174, %v1174
    %v1239 = vmul.f32 %v1175, %v1175
    %v1240 = vmul.f32 %v1176, %v1176
    %v1241 = vmul.f32 %v1177, %v1177
    %v1242 = vmul.f32 %v1178, %v1178
    %v1243 = vmul.f32 %v1179, %v1179
    %v1244 = vmul.f32 %v1180, %v1180
    %v1245 = vmul.f32 %v1181, %v1181
    %v1246 = vmul.f32 %v1182, %v1182
    %v1247 = vmul.f32 %v1183, %v1183
    %v1248 = vmul.f32 %v1184, %v1184
    %v1249 = vmul.f32 %v1185, %v1185
    %v1250 = vmul.f32 %v1186, %v1186
    %v1251 = vmul.f32 %v1187, %v1187
    %v1252 = vmul.f32 %v1188, %v1188
    %v1253 = vmul.f32 %v1189, %v1189
    %v1254 = vmul.f32 %v1190, %v1190
    %v1255 = vmul.f32 %v1191, %v1191
    %v1256 = vmul.f32 %v1192, %v1192
    %v1257 = vmul.f32 %v1193, %v1193
    %v1258 = vmul.f32 %v1194, %v1194
    %v1259 = vmul.f32 %v1195, %v1195
    %v1260 = vmul.f32 %v1196, %v1196
    %v1261 = vmul.f32 %v1197, %v1197
    %v1262 = vmul.f32 %v1198, %v1198
    %v1263 = vmul.f32 %v1199, %v1199
    %v1264 = vmul.f32 %v1200, %v1200
    %v1265 = vmul.f32 %v1201, %v1201
    %v1266 = vmul.f32 %v1202, %v1202
    %v1267 = vmul.f32 %v1203, %v1203
    %v1268 = vmul.f32 %v1204, %v1204
    %v1269 = vmul.f32 %v1205, %v1205
    %v1270 = vmul.f32 %v1206, %v1206
    %v1271 = vmul.f32 %v1207, %v1207
    %v1272 = vmul.f32 %v1208, %v1208
    %v1273 = vmul.f32 %v1209, %v1209
    %v1274 = vmul.f32 %v1210, %v1210
    %v1275 = vmul.f32 %v1211, %v1211
    %v1276 = vmul.f32 %v1212, %v1212
    %v1277 = vadd.f32 %v1213, %v1215
    %v1278 = vadd.f32 %v1277, %v1217
    %v1279 = vadd.f32 %v1278, %v1219
    %v1280 = vadd.f32 %v1279, %v1221
    %v1281 = vadd.f32 %v1280, %v1223
    %v1282 = vadd.f32 %v1281, %v1225
    %v1283 = vadd.f32 %v1282, %v1227
    %v1284 = vadd.f32 %v1283, %v1229
    %v1285 = vadd.f32 %v1284, %v1231
    %v1286 = vadd.f32 %v1285, %v1233
    %v1287 = vadd.f32 %v1286, %v1235
    %v1288 = vadd.f32 %v1287, %v1237
    %v1289 = vadd.f32 %v1288, %v1239
    %v1290 = vadd.f32 %v1289, %v1241
    %v1291 = vadd.f32 %v1290, %v1243
    %v1292 = vadd.f32 %v1291, %v1245
    %v1293 = vadd.f32 %v1292, %v1247
    %v1294 = vadd.f32 %v1293, %v1249
    %v1295 = vadd.f32 %v1294, %v1251
    %v1296 = vadd.f32 %v1295, %v1253
    %v1297 = vadd.f32 %v1296, %v1255
    %v1298 = vadd.f32 %v1297, %v1257
    %v1299 = vadd.f32 %v1298, %v1259
    %v1300 = vadd.f32 %v1299, %v1261
    %v1301 = vadd.f32 %v1300, %v1263
    %v1302 = vadd.f32 %v1301, %v1265
    %v1303 = vadd.f32 %v1302, %v1267
    %v1304 = vadd.f32 %v1303, %v1269
    %v1305 = vadd.f32 %v1304, %v1271
    %v1306 = vadd.f32 %v1305, %v1273
    %v1307 = vadd.f32 %v1306, %v1275
    %v1308 = vrot.slane %v1307, 4
    %v1309 = vadd.f32 %v1307, %v1308
    %v1310 = vrot.slane %v1309, 2
    %v1311 = vadd.f32 %v1309, %v1310
    %v1312 = vrot.slane %v1311, 1
    %v1313 = vadd.f32 %v1311, %v1312
    %v1314 = vadd.f32 %v1214, %v1216
    %v1315 = vadd.f32 %v1314, %v1218
    %v1316 = vadd.f32 %v1315, %v1220
    %v1317 = vadd.f32 %v1316, %v1222
    %v1318 = vadd.f32 %v1317, %v1224
    %v1319 = vadd.f32 %v1318, %v1226
    %v1320 = vadd.f32 %v1319, %v1228
    %v1321 = vadd.f32 %v1320, %v1230
    %v1322 = vadd.f32 %v1321, %v1232
    %v1323 = vadd.f32 %v1322, %v1234
    %v1324 = vadd.f32 %v1323, %v1236
    %v1325 = vadd.f32 %v1324, %v1238
    %v1326 = vadd.f32 %v1325, %v1240
    %v1327 = vadd.f32 %v1326, %v1242
    %v1328 = vadd.f32 %v1327, %v1244
    %v1329 = vadd.f32 %v1328, %v1246
    %v1330 = vadd.f32 %v1329, %v1248
    %v1331 = vadd.f32 %v1330, %v1250
    %v1332 = vadd.f32 %v1331, %v1252
    %v1333 = vadd.f32 %v1332, %v1254
    %v1334 = vadd.f32 %v1333, %v1256
    %v1335 = vadd.f32 %v1334, %v1258
    %v1336 = vadd.f32 %v1335, %v1260
    %v1337 = vadd.f32 %v1336, %v1262
    %v1338 = vadd.f32 %v1337, %v1264
    %v1339 = vadd.f32 %v1338, %v1266
    %v1340 = vadd.f32 %v1339, %v1268
    %v1341 = vadd.f32 %v1340, %v1270
    %v1342 = vadd.f32 %v1341, %v1272
    %v1343 = vadd.f32 %v1342, %v1274
    %v1344 = vadd.f32 %v1343, %v1276
    %v1345 = vrot.slane %v1344, 4
    %v1346 = vadd.f32 %v1344, %v1345
    %v1347 = vrot.slane %v1346, 2
    %v1348 = vadd.f32 %v1346, %v1347
    %v1349 = vrot.slane %v1348, 1
    %v1350 = vadd.f32 %v1348, %v1349
    %v1351 = vmul.f32 %v1313, 0.00390625
    %v1352 = vmul.f32 %v1350, 0.00390625
    %v1353 = vadd.f32 %v1351, 1e-05
    %v1354 = vadd.f32 %v1352, 1e-05
    %v1355 = vrsqrt.pop %v1353
    %v1356 = vrsqrt.pop %v1354
    %v1359 = vcombine.low %v1355, %v1356
    %v1360 = vrot.slane %v1359, 7
    %v1362 = vmul.f32 %v620, %v1360
    %v1364 = vlaneseq
    %v1365 = vshrl.u32 %v1364, 7
    %v1366 = vsub.s32 1, %v1365
    %v1367 = vrot.slane %v1362, %v1366
    %v1368 = vlaneseq
    %v1369 = vshrl.u32 %v1368, 7
    %v1370 = vsub.s32 5, %v1369
    %v1371 = vrot.slane %v1362, %v1370
    %v1374 = vlaneseq
    %v1375 = vshrl.u32 %v1374, 7
    %v1376 = vsub.s32 1, %v1375
    %v1377 = vrot.slane %v1367, %v1376
    %v1378 = vlaneseq
    %v1379 = vshrl.u32 %v1378, 7
    %v1380 = vsub.s32 1, %v1379
    %v1381 = vrot.slane %v1371, %v1380
    %v1382 = vmul.f32 %v1149, %v1377
    %v1383 = vmul.f32 %v1150, %v1381
    %v1384 = vmul.f32 %v1151, %v1377
    %v1385 = vmul.f32 %v1152, %v1381
    %v1386 = vmul.f32 %v1153, %v1377
    %v1387 = vmul.f32 %v1154, %v1381
    %v1388 = vmul.f32 %v1155, %v1377
    %v1389 = vmul.f32 %v1156, %v1381
    %v1390 = vmul.f32 %v1157, %v1377
    %v1391 = vmul.f32 %v1158, %v1381
    %v1392 = vmul.f32 %v1159, %v1377
    %v1393 = vmul.f32 %v1160, %v1381
    %v1394 = vmul.f32 %v1161, %v1377
    %v1395 = vmul.f32 %v1162, %v1381
    %v1396 = vmul.f32 %v1163, %v1377
    %v1397 = vmul.f32 %v1164, %v1381
    %v1398 = vmul.f32 %v1165, %v1377
    %v1399 = vmul.f32 %v1166, %v1381
    %v1400 = vmul.f32 %v1167, %v1377
    %v1401 = vmul.f32 %v1168, %v1381
    %v1402 = vmul.f32 %v1169, %v1377
    %v1403 = vmul.f32 %v1170, %v1381
    %v1404 = vmul.f32 %v1171, %v1377
    %v1405 = vmul.f32 %v1172, %v1381
    %v1406 = vmul.f32 %v1173, %v1377
    %v1407 = vmul.f32 %v1174, %v1381
    %v1408 = vmul.f32 %v1175, %v1377
    %v1409 = vmul.f32 %v1176, %v1381
    %v1410 = vmul.f32 %v1177, %v1377
    %v1411 = vmul.f32 %v1178, %v1381
    %v1412 = vmul.f32 %v1179, %v1377
    %v1413 = vmul.f32 %v1180, %v1381
    %v1414 = vmul.f32 %v1181, %v1377
    %v1415 = vmul.f32 %v1182, %v1381
    %v1416 = vmul.f32 %v1183, %v1377
    %v1417 = vmul.f32 %v1184, %v1381
    %v1418 = vmul.f32 %v1185, %v1377
    %v1419 = vmul.f32 %v1186, %v1381
    %v1420 = vmul.f32 %v1187, %v1377
    %v1421 = vmul.f32 %v1188, %v1381
    %v1422 = vmul.f32 %v1189, %v1377
    %v1423 = vmul.f32 %v1190, %v1381
    %v1424 = vmul.f32 %v1191, %v1377
    %v1425 = vmul.f32 %v1192, %v1381
    %v1426 = vmul.f32 %v1193, %v1377
    %v1427 = vmul.f32 %v1194, %v1381
    %v1428 = vmul.f32 %v1195, %v1377
    %v1429 = vmul.f32 %v1196, %v1381
    %v1430 = vmul.f32 %v1197, %v1377
    %v1431 = vmul.f32 %v1198, %v1381
    %v1432 = vmul.f32 %v1199, %v1377
    %v1433 = vmul.f32 %v1200, %v1381
    %v1434 = vmul.f32 %v1201, %v1377
    %v1435 = vmul.f32 %v1202, %v1381
    %v1436 = vmul.f32 %v1203, %v1377
    %v1437 = vmul.f32 %v1204, %v1381
    %v1438 = vmul.f32 %v1205, %v1377
    %v1439 = vmul.f32 %v1206, %v1381
    %v1440 = vmul.f32 %v1207, %v1377
    %v1441 = vmul.f32 %v1208, %v1381
    %v1442 = vmul.f32 %v1209, %v1377
    %v1443 = vmul.f32 %v1210, %v1381
    %v1444 = vmul.f32 %v1211, %v1377
    %v1445 = vmul.f32 %v1212, %v1381
    %v1446 = vlaneseq
    %v1447 = vshrl.u32 %v1446, 7
    %v1448 = vsub.s32 2, %v1447
    %v1449 = vrot.slane %v620, %v1448
    %v1450 = vlaneseq
    %v1451 = vshrl.u32 %v1450, 7
    %v1452 = vsub.s32 6, %v1451
    %v1453 = vrot.slane %v620, %v1452
    %v1456 = vlaneseq
    %v1457 = vshrl.u32 %v1456, 7
    %v1458 = vsub.s32 2, %v1457
    %v1459 = vrot.slane %v1449, %v1458
    %v1460 = vlaneseq
    %v1461 = vshrl.u32 %v1460, 7
    %v1462 = vsub.s32 2, %v1461
    %v1463 = vrot.slane %v1453, %v1462
    %v1464 = vadd.f32 %v1382, %v1459
    %v1465 = vadd.f32 %v1383, %v1463
    %v1466 = vadd.f32 %v1384, %v1459
    %v1467 = vadd.f32 %v1385, %v1463
    %v1468 = vadd.f32 %v1386, %v1459
    %v1469 = vadd.f32 %v1387, %v1463
    %v1470 = vadd.f32 %v1388, %v1459
    %v1471 = vadd.f32 %v1389, %v1463
    %v1472 = vadd.f32 %v1390, %v1459
    %v1473 = vadd.f32 %v1391, %v1463
    %v1474 = vadd.f32 %v1392, %v1459
    %v1475 = vadd.f32 %v1393, %v1463
    %v1476 = vadd.f32 %v1394, %v1459
    %v1477 = vadd.f32 %v1395, %v1463
    %v1478 = vadd.f32 %v1396, %v1459
    %v1479 = vadd.f32 %v1397, %v1463
    %v1480 = vadd.f32 %v1398, %v1459
    %v1481 = vadd.f32 %v1399, %v1463
    %v1482 = vadd.f32 %v1400, %v1459
    %v1483 = vadd.f32 %v1401, %v1463
    %v1484 = vadd.f32 %v1402, %v1459
    %v1485 = vadd.f32 %v1403, %v1463
    %v1486 = vadd.f32 %v1404, %v1459
    %v1487 = vadd.f32 %v1405, %v1463
    %v1488 = vadd.f32 %v1406, %v1459
    %v1489 = vadd.f32 %v1407, %v1463
    %v1490 = vadd.f32 %v1408, %v1459
    %v1491 = vadd.f32 %v1409, %v1463
    %v1492 = vadd.f32 %v1410, %v1459
    %v1493 = vadd.f32 %v1411, %v1463
    %v1494 = vadd.f32 %v1412, %v1459
    %v1495 = vadd.f32 %v1413, %v1463
    %v1496 = vadd.f32 %v1414, %v1459
    %v1497 = vadd.f32 %v1415, %v1463
    %v1498 = vadd.f32 %v1416, %v1459
    %v1499 = vadd.f32 %v1417, %v1463
    %v1500 = vadd.f32 %v1418, %v1459
    %v1501 = vadd.f32 %v1419, %v1463
    %v1502 = vadd.f32 %v1420, %v1459
    %v1503 = vadd.f32 %v1421, %v1463
    %v1504 = vadd.f32 %v1422, %v1459
    %v1505 = vadd.f32 %v1423, %v1463
    %v1506 = vadd.f32 %v1424, %v1459
    %v1507 = vadd.f32 %v1425, %v1463
    %v1508 = vadd.f32 %v1426, %v1459
    %v1509 = vadd.f32 %v1427, %v1463
    %v1510 = vadd.f32 %v1428, %v1459
    %v1511 = vadd.f32 %v1429, %v1463
    %v1512 = vadd.f32 %v1430, %v1459
    %v1513 = vadd.f32 %v1431, %v1463
    %v1514 = vadd.f32 %v1432, %v1459
    %v1515 = vadd.f32 %v1433, %v1463
    %v1516 = vadd.f32 %v1434, %v1459
    %v1517 = vadd.f32 %v1435, %v1463
    %v1518 = vadd.f32 %v1436, %v1459
    %v1519 = vadd.f32 %v1437, %v1463
    %v1520 = vadd.f32 %v1438, %v1459
    %v1521 = vadd.f32 %v1439, %v1463
    %v1522 = vadd.f32 %v1440, %v1459
    %v1523 = vadd.f32 %v1441, %v1463
    %v1524 = vadd.f32 %v1442, %v1459
    %v1525 = vadd.f32 %v1443, %v1463
    %v1526 = vadd.f32 %v1444, %v1459
    %v1527 = vadd.f32 %v1445, %v1463
    %v1528 = vld [vmem:[%s6] sm:$0x77]
    %v1529 = vpack.c.bf16 %v1466, %v1464
    %v1530 = vpack.c.bf16 %v1467, %v1465
    %v1531 = vpack.c.bf16 %v1470, %v1468
    %v1532 = vpack.c.bf16 %v1471, %v1469
    %v1533 = vpack.c.bf16 %v1474, %v1472
    %v1534 = vpack.c.bf16 %v1475, %v1473
    %v1535 = vpack.c.bf16 %v1478, %v1476
    %v1536 = vpack.c.bf16 %v1479, %v1477
    %v1537 = vpack.c.bf16 %v1482, %v1480
    %v1538 = vpack.c.bf16 %v1483, %v1481
    %v1539 = vpack.c.bf16 %v1486, %v1484
    %v1540 = vpack.c.bf16 %v1487, %v1485
    %v1541 = vpack.c.bf16 %v1490, %v1488
    %v1542 = vpack.c.bf16 %v1491, %v1489
    %v1543 = vpack.c.bf16 %v1494, %v1492
    %v1544 = vpack.c.bf16 %v1495, %v1493
    %v1545 = vpack.c.bf16 %v1498, %v1496
    %v1546 = vpack.c.bf16 %v1499, %v1497
    %v1547 = vpack.c.bf16 %v1502, %v1500
    %v1548 = vpack.c.bf16 %v1503, %v1501
    %v1549 = vpack.c.bf16 %v1506, %v1504
    %v1550 = vpack.c.bf16 %v1507, %v1505
    %v1551 = vpack.c.bf16 %v1510, %v1508
    %v1552 = vpack.c.bf16 %v1511, %v1509
    %v1553 = vpack.c.bf16 %v1514, %v1512
    %v1554 = vpack.c.bf16 %v1515, %v1513
    %v1555 = vpack.c.bf16 %v1518, %v1516
    %v1556 = vpack.c.bf16 %v1519, %v1517
    %v1557 = vpack.c.bf16 %v1522, %v1520
    %v1558 = vpack.c.bf16 %v1523, %v1521
    %v1559 = vpack.c.bf16 %v1526, %v1524
    %v1560 = vpack.c.bf16 %v1527, %v1525
    %v1561 = vld [vmem:[%s5] sm:$0xff]
    %v1562 = vld [vmem:[%s5 + $0x8] sm:$0xff]
    %v1563 = vld [vmem:[%s5 + $0x10] sm:$0xff]
    %v1564 = vld [vmem:[%s5 + $0x18] sm:$0xff]
    %v1565 = vld [vmem:[%s5 + $0x20] sm:$0xff]
    %v1566 = vld [vmem:[%s5 + $0x28] sm:$0xff]
    %v1567 = vld [vmem:[%s5 + $0x30] sm:$0xff]
    %v1568 = vld [vmem:[%s5 + $0x38] sm:$0xff]
    %v1569 = vld [vmem:[%s5 + $0x40] sm:$0xff]
    %v1570 = vld [vmem:[%s5 + $0x48] sm:$0xff]
    %v1571 = vld [vmem:[%s5 + $0x50] sm:$0xff]
    %v1572 = vld [vmem:[%s5 + $0x58] sm:$0xff]
    %v1573 = vld [vmem:[%s5 + $0x60] sm:$0xff]
    %v1574 = vld [vmem:[%s5 + $0x68] sm:$0xff]
    %v1575 = vld [vmem:[%s5 + $0x70] sm:$0xff]
    %v1576 = vld [vmem:[%s5 + $0x78] sm:$0xff]
    %v1577 = vld [vmem:[%s5 + $0x80] sm:$0xff]
    %v1578 = vld [vmem:[%s5 + $0x88] sm:$0xff]
    %v1579 = vld [vmem:[%s5 + $0x90] sm:$0xff]
    %v1580 = vld [vmem:[%s5 + $0x98] sm:$0xff]
    %v1581 = vld [vmem:[%s5 + $0xa0] sm:$0xff]
    %v1582 = vld [vmem:[%s5 + $0xa8] sm:$0xff]
    %v1583 = vld [vmem:[%s5 + $0xb0] sm:$0xff]
    %v1584 = vld [vmem:[%s5 + $0xb8] sm:$0xff]
    %v1585 = vld [vmem:[%s5 + $0xc0] sm:$0xff]
    %v1586 = vld [vmem:[%s5 + $0xc8] sm:$0xff]
    %v1587 = vld [vmem:[%s5 + $0xd0] sm:$0xff]
    %v1588 = vld [vmem:[%s5 + $0xd8] sm:$0xff]
    %v1589 = vld [vmem:[%s5 + $0xe0] sm:$0xff]
    %v1590 = vld [vmem:[%s5 + $0xe8] sm:$0xff]
    %v1591 = vld [vmem:[%s5 + $0xf0] sm:$0xff]
    %v1592 = vld [vmem:[%s5 + $0xf8] sm:$0xff]
    %v1594 = vlaneseq
    %v1595 = vshrl.u32 %v1594, 7
    %v1596 = vsub.s32 0, %v1595
    %v1597 = vrot.slane %v1528, %v1596
    %v1598 = vlaneseq
    %v1599 = vshrl.u32 %v1598, 7
    %v1600 = vsub.s32 4, %v1599
    %v1601 = vrot.slane %v1528, %v1600
    %v1604 = vlaneseq
    %v1605 = vshrl.u32 %v1604, 7
    %v1606 = vsub.s32 0, %v1605
    %v1607 = vrot.slane %v1597, %v1606
    %v1608 = vlaneseq
    %v1609 = vshrl.u32 %v1608, 7
    %v1610 = vsub.s32 0, %v1609
    %v1611 = vrot.slane %v1601, %v1610
    %v1644 = vunpack.c.l.b16 %v1561
    %v1645 = vunpack.c.h.b16 %v1561
    %v1646 = vunpack.c.l.b16 %v1562
    %v1647 = vunpack.c.h.b16 %v1562
    %v1648 = vunpack.c.l.b16 %v1563
    %v1649 = vunpack.c.h.b16 %v1563
    %v1650 = vunpack.c.l.b16 %v1564
    %v1651 = vunpack.c.h.b16 %v1564
    %v1652 = vunpack.c.l.b16 %v1565
    %v1653 = vunpack.c.h.b16 %v1565
    %v1654 = vunpack.c.l.b16 %v1566
    %v1655 = vunpack.c.h.b16 %v1566
    %v1656 = vunpack.c.l.b16 %v1567
    %v1657 = vunpack.c.h.b16 %v1567
    %v1658 = vunpack.c.l.b16 %v1568
    %v1659 = vunpack.c.h.b16 %v1568
    %v1660 = vunpack.c.l.b16 %v1569
    %v1661 = vunpack.c.h.b16 %v1569
    %v1662 = vunpack.c.l.b16 %v1570
    %v1663 = vunpack.c.h.b16 %v1570
    %v1664 = vunpack.c.l.b16 %v1571
    %v1665 = vunpack.c.h.b16 %v1571
    %v1666 = vunpack.c.l.b16 %v1572
    %v1667 = vunpack.c.h.b16 %v1572
    %v1668 = vunpack.c.l.b16 %v1573
    %v1669 = vunpack.c.h.b16 %v1573
    %v1670 = vunpack.c.l.b16 %v1574
    %v1671 = vunpack.c.h.b16 %v1574
    %v1672 = vunpack.c.l.b16 %v1575
    %v1673 = vunpack.c.h.b16 %v1575
    %v1674 = vunpack.c.l.b16 %v1576
    %v1675 = vunpack.c.h.b16 %v1576
    %v1676 = vunpack.c.l.b16 %v1577
    %v1677 = vunpack.c.h.b16 %v1577
    %v1678 = vunpack.c.l.b16 %v1578
    %v1679 = vunpack.c.h.b16 %v1578
    %v1680 = vunpack.c.l.b16 %v1579
    %v1681 = vunpack.c.h.b16 %v1579
    %v1682 = vunpack.c.l.b16 %v1580
    %v1683 = vunpack.c.h.b16 %v1580
    %v1684 = vunpack.c.l.b16 %v1581
    %v1685 = vunpack.c.h.b16 %v1581
    %v1686 = vunpack.c.l.b16 %v1582
    %v1687 = vunpack.c.h.b16 %v1582
    %v1688 = vunpack.c.l.b16 %v1583
    %v1689 = vunpack.c.h.b16 %v1583
    %v1690 = vunpack.c.l.b16 %v1584
    %v1691 = vunpack.c.h.b16 %v1584
    %v1692 = vunpack.c.l.b16 %v1585
    %v1693 = vunpack.c.h.b16 %v1585
    %v1694 = vunpack.c.l.b16 %v1586
    %v1695 = vunpack.c.h.b16 %v1586
    %v1696 = vunpack.c.l.b16 %v1587
    %v1697 = vunpack.c.h.b16 %v1587
    %v1698 = vunpack.c.l.b16 %v1588
    %v1699 = vunpack.c.h.b16 %v1588
    %v1700 = vunpack.c.l.b16 %v1589
    %v1701 = vunpack.c.h.b16 %v1589
    %v1702 = vunpack.c.l.b16 %v1590
    %v1703 = vunpack.c.h.b16 %v1590
    %v1704 = vunpack.c.l.b16 %v1591
    %v1705 = vunpack.c.h.b16 %v1591
    %v1706 = vunpack.c.l.b16 %v1592
    %v1707 = vunpack.c.h.b16 %v1592
    %v1708 = vpack.c.b16 %v1646, %v1644
    %v1709 = vpack.c.b16 %v1647, %v1645
    %v1710 = vpack.c.b16 %v1650, %v1648
    %v1711 = vpack.c.b16 %v1651, %v1649
    %v1712 = vpack.c.b16 %v1654, %v1652
    %v1713 = vpack.c.b16 %v1655, %v1653
    %v1714 = vpack.c.b16 %v1658, %v1656
    %v1715 = vpack.c.b16 %v1659, %v1657
    %v1716 = vpack.c.b16 %v1662, %v1660
    %v1717 = vpack.c.b16 %v1663, %v1661
    %v1718 = vpack.c.b16 %v1666, %v1664
    %v1719 = vpack.c.b16 %v1667, %v1665
    %v1720 = vpack.c.b16 %v1670, %v1668
    %v1721 = vpack.c.b16 %v1671, %v1669
    %v1722 = vpack.c.b16 %v1674, %v1672
    %v1723 = vpack.c.b16 %v1675, %v1673
    %v1724 = vpack.c.b16 %v1678, %v1676
    %v1725 = vpack.c.b16 %v1679, %v1677
    %v1726 = vpack.c.b16 %v1682, %v1680
    %v1727 = vpack.c.b16 %v1683, %v1681
    %v1728 = vpack.c.b16 %v1686, %v1684
    %v1729 = vpack.c.b16 %v1687, %v1685
    %v1730 = vpack.c.b16 %v1690, %v1688
    %v1731 = vpack.c.b16 %v1691, %v1689
    %v1732 = vpack.c.b16 %v1694, %v1692
    %v1733 = vpack.c.b16 %v1695, %v1693
    %v1734 = vpack.c.b16 %v1698, %v1696
    %v1735 = vpack.c.b16 %v1699, %v1697
    %v1736 = vpack.c.b16 %v1702, %v1700
    %v1737 = vpack.c.b16 %v1703, %v1701
    %v1738 = vpack.c.b16 %v1706, %v1704
    %v1739 = vpack.c.b16 %v1707, %v1705
    %1772 = vmatprep.subr.bf16.mxu0 %v1709
    %1773 = vmatpush1.bf16.msra.mxu0 %v1708
    %1774 = vmatprep.subr.bf16.mxu0 %v1711
    %1775 = vmatpush1.bf16.msra.mxu0 %v1710
    %1776 = vmatprep.subr.bf16.mxu0 %v1713
    %1777 = vmatpush1.bf16.msra.mxu0 %v1712
    %1778 = vmatprep.subr.bf16.mxu0 %v1715
    %1779 = vmatpush1.bf16.msra.mxu0 %v1714
    %1780 = vmatprep.subr.bf16.mxu0 %v1717
    %1781 = vmatpush1.bf16.msra.mxu0 %v1716
    %1782 = vmatprep.subr.bf16.mxu0 %v1719
    %1783 = vmatpush1.bf16.msra.mxu0 %v1718
    %1784 = vmatprep.subr.bf16.mxu0 %v1721
    %1785 = vmatpush1.bf16.msra.mxu0 %v1720
    %1786 = vmatprep.subr.bf16.mxu0 %v1723
    %1787 = vmatpush1.bf16.msra.mxu0 %v1722
    %1788 = vmatprep.subr.bf16.mxu0 %v1725
    %1789 = vmatpush1.bf16.msra.mxu0 %v1724
    %1790 = vmatprep.subr.bf16.mxu0 %v1727
    %1791 = vmatpush1.bf16.msra.mxu0 %v1726
    %1792 = vmatprep.subr.bf16.mxu0 %v1729
    %1793 = vmatpush1.bf16.msra.mxu0 %v1728
    %1794 = vmatprep.subr.bf16.mxu0 %v1731
    %1795 = vmatpush1.bf16.msra.mxu0 %v1730
    %1796 = vmatprep.subr.bf16.mxu0 %v1733
    %1797 = vmatpush1.bf16.msra.mxu0 %v1732
    %1798 = vmatprep.subr.bf16.mxu0 %v1735
    %1799 = vmatpush1.bf16.msra.mxu0 %v1734
    %1800 = vmatprep.subr.bf16.mxu0 %v1737
    %1801 = vmatpush1.bf16.msra.mxu0 %v1736
    %1802 = vmatprep.subr.bf16.mxu0 %v1739
    %1803 = vmatpush1.bf16.msra.mxu0 %v1738
    %1804 = vmatprep.mubr.bf16.mxu0 %v1530
    %1805 = vmatmul.mubr.bf16.gmra.mrb[0].mxu0 %v1529
    %v1806 = vpop.f32.mrb[0].mxu0
    %v1807 = vadd.f32 %v1607, %v1806
    %v1808 = vpop.f32.mrb[0].mxu0
    %v1809 = vadd.f32 %v1611, %v1808
    %v1810 = vpop.f32.mrb[0].mxu0
    %v1811 = vadd.f32 %v1607, %v1810
    %v1812 = vpop.f32.mrb[0].mxu0
    %v1813 = vadd.f32 %v1611, %v1812
    %1814 = vmatprep.mubr.bf16.mxu0 %v1532
    %1815 = vmatmul.mubr.bf16.gmra.mrb[0].mxu0 %v1531
    %v1816 = vpop.f32.mrb[0].mxu0
    %v1817 = vadd.f32 %v1607, %v1816
    %v1818 = vpop.f32.mrb[0].mxu0
    %v1819 = vadd.f32 %v1611, %v1818
    %v1820 = vpop.f32.mrb[0].mxu0
    %v1821 = vadd.f32 %v1607, %v1820
    %v1822 = vpop.f32.mrb[0].mxu0
    %v1823 = vadd.f32 %v1611, %v1822
    %1824 = vmatprep.mubr.bf16.mxu0 %v1534
    %1825 = vmatmul.mubr.bf16.gmra.mrb[0].mxu0 %v1533
    %v1826 = vpop.f32.mrb[0].mxu0
    %v1827 = vadd.f32 %v1607, %v1826
    %v1828 = vpop.f32.mrb[0].mxu0
    %v1829 = vadd.f32 %v1611, %v1828
    %v1830 = vpop.f32.mrb[0].mxu0
    %v1831 = vadd.f32 %v1607, %v1830
    %v1832 = vpop.f32.mrb[0].mxu0
    %v1833 = vadd.f32 %v1611, %v1832
    %1834 = vmatprep.mubr.bf16.mxu0 %v1536
    %1835 = vmatmul.mubr.bf16.gmra.mrb[0].mxu0 %v1535
    %v1836 = vpop.f32.mrb[0].mxu0
    %v1837 = vadd.f32 %v1607, %v1836
    %v1838 = vpop.f32.mrb[0].mxu0
    %v1839 = vadd.f32 %v1611, %v1838
    %v1840 = vpop.f32.mrb[0].mxu0
    %v1841 = vadd.f32 %v1607, %v1840
    %v1842 = vpop.f32.mrb[0].mxu0
    %v1843 = vadd.f32 %v1611, %v1842
    %1844 = vmatprep.mubr.bf16.mxu0 %v1538
    %1845 = vmatmul.mubr.bf16.gmra.mrb[0].mxu0 %v1537
    %v1846 = vpop.f32.mrb[0].mxu0
    %v1847 = vadd.f32 %v1607, %v1846
    %v1848 = vpop.f32.mrb[0].mxu0
    %v1849 = vadd.f32 %v1611, %v1848
    %v1850 = vpop.f32.mrb[0].mxu0
    %v1851 = vadd.f32 %v1607, %v1850
    %v1852 = vpop.f32.mrb[0].mxu0
    %v1853 = vadd.f32 %v1611, %v1852
    %1854 = vmatprep.mubr.bf16.mxu0 %v1540
    %1855 = vmatmul.mubr.bf16.gmra.mrb[0].mxu0 %v1539
    %v1856 = vpop.f32.mrb[0].mxu0
    %v1857 = vadd.f32 %v1607, %v1856
    %v1858 = vpop.f32.mrb[0].mxu0
    %v1859 = vadd.f32 %v1611, %v1858
    %v1860 = vpop.f32.mrb[0].mxu0
    %v1861 = vadd.f32 %v1607, %v1860
    %v1862 = vpop.f32.mrb[0].mxu0
    %v1863 = vadd.f32 %v1611, %v1862
    %1864 = vmatprep.mubr.bf16.mxu0 %v1542
    %1865 = vmatmul.mubr.bf16.gmra.mrb[0].mxu0 %v1541
    %v1866 = vpop.f32.mrb[0].mxu0
    %v1867 = vadd.f32 %v1607, %v1866
    %v1868 = vpop.f32.mrb[0].mxu0
    %v1869 = vadd.f32 %v1611, %v1868
    %v1870 = vpop.f32.mrb[0].mxu0
    %v1871 = vadd.f32 %v1607, %v1870
    %v1872 = vpop.f32.mrb[0].mxu0
    %v1873 = vadd.f32 %v1611, %v1872
    %1874 = vmatprep.mubr.bf16.mxu0 %v1544
    %1875 = vmatmul.mubr.bf16.gmra.mrb[0].mxu0 %v1543
    %v1876 = vpop.f32.mrb[0].mxu0
    %v1877 = vadd.f32 %v1607, %v1876
    %v1878 = vpop.f32.mrb[0].mxu0
    %v1879 = vadd.f32 %v1611, %v1878
    %v1880 = vpop.f32.mrb[0].mxu0
    %v1881 = vadd.f32 %v1607, %v1880
    %v1882 = vpop.f32.mrb[0].mxu0
    %v1883 = vadd.f32 %v1611, %v1882
    %1884 = vmatprep.mubr.bf16.mxu0 %v1546
    %1885 = vmatmul.mubr.bf16.gmra.mrb[0].mxu0 %v1545
    %v1886 = vpop.f32.mrb[0].mxu0
    %v1887 = vadd.f32 %v1607, %v1886
    %v1888 = vpop.f32.mrb[0].mxu0
    %v1889 = vadd.f32 %v1611, %v1888
    %v1890 = vpop.f32.mrb[0].mxu0
    %v1891 = vadd.f32 %v1607, %v1890
    %v1892 = vpop.f32.mrb[0].mxu0
    %v1893 = vadd.f32 %v1611, %v1892
    %1894 = vmatprep.mubr.bf16.mxu0 %v1548
    %1895 = vmatmul.mubr.bf16.gmra.mrb[0].mxu0 %v1547
    %v1896 = vpop.f32.mrb[0].mxu0
    %v1897 = vadd.f32 %v1607, %v1896
    %v1898 = vpop.f32.mrb[0].mxu0
    %v1899 = vadd.f32 %v1611, %v1898
    %v1900 = vpop.f32.mrb[0].mxu0
    %v1901 = vadd.f32 %v1607, %v1900
    %v1902 = vpop.f32.mrb[0].mxu0
    %v1903 = vadd.f32 %v1611, %v1902
    %1904 = vmatprep.mubr.bf16.mxu0 %v1550
    %1905 = vmatmul.mubr.bf16.gmra.mrb[0].mxu0 %v1549
    %v1906 = vpop.f32.mrb[0].mxu0
    %v1907 = vadd.f32 %v1607, %v1906
    %v1908 = vpop.f32.mrb[0].mxu0
    %v1909 = vadd.f32 %v1611, %v1908
    %v1910 = vpop.f32.mrb[0].mxu0
    %v1911 = vadd.f32 %v1607, %v1910
    %v1912 = vpop.f32.mrb[0].mxu0
    %v1913 = vadd.f32 %v1611, %v1912
    %1914 = vmatprep.mubr.bf16.mxu0 %v1552
    %1915 = vmatmul.mubr.bf16.gmra.mrb[0].mxu0 %v1551
    %v1916 = vpop.f32.mrb[0].mxu0
    %v1917 = vadd.f32 %v1607, %v1916
    %v1918 = vpop.f32.mrb[0].mxu0
    %v1919 = vadd.f32 %v1611, %v1918
    %v1920 = vpop.f32.mrb[0].mxu0
    %v1921 = vadd.f32 %v1607, %v1920
    %v1922 = vpop.f32.mrb[0].mxu0
    %v1923 = vadd.f32 %v1611, %v1922
    %1924 = vmatprep.mubr.bf16.mxu0 %v1554
    %1925 = vmatmul.mubr.bf16.gmra.mrb[0].mxu0 %v1553
    %v1926 = vpop.f32.mrb[0].mxu0
    %v1927 = vadd.f32 %v1607, %v1926
    %v1928 = vpop.f32.mrb[0].mxu0
    %v1929 = vadd.f32 %v1611, %v1928
    %v1930 = vpop.f32.mrb[0].mxu0
    %v1931 = vadd.f32 %v1607, %v1930
    %v1932 = vpop.f32.mrb[0].mxu0
    %v1933 = vadd.f32 %v1611, %v1932
    %1934 = vmatprep.mubr.bf16.mxu0 %v1556
    %1935 = vmatmul.mubr.bf16.gmra.mrb[0].mxu0 %v1555
    %v1936 = vpop.f32.mrb[0].mxu0
    %v1937 = vadd.f32 %v1607, %v1936
    %v1938 = vpop.f32.mrb[0].mxu0
    %v1939 = vadd.f32 %v1611, %v1938
    %v1940 = vpop.f32.mrb[0].mxu0
    %v1941 = vadd.f32 %v1607, %v1940
    %v1942 = vpop.f32.mrb[0].mxu0
    %v1943 = vadd.f32 %v1611, %v1942
    %1944 = vmatprep.mubr.bf16.mxu0 %v1558
    %1945 = vmatmul.mubr.bf16.gmra.mrb[0].mxu0 %v1557
    %v1946 = vpop.f32.mrb[0].mxu0
    %v1947 = vadd.f32 %v1607, %v1946
    %v1948 = vpop.f32.mrb[0].mxu0
    %v1949 = vadd.f32 %v1611, %v1948
    %v1950 = vpop.f32.mrb[0].mxu0
    %v1951 = vadd.f32 %v1607, %v1950
    %v1952 = vpop.f32.mrb[0].mxu0
    %v1953 = vadd.f32 %v1611, %v1952
    %1954 = vmatprep.mubr.bf16.mxu0 %v1560
    %1955 = vmatmul.mubr.bf16.gmra.mrb[0].mxu0 %v1559
    %v1956 = vpop.f32.mrb[0].mxu0
    %v1957 = vadd.f32 %v1607, %v1956
    %v1958 = vpop.f32.mrb[0].mxu0
    %v1959 = vadd.f32 %v1611, %v1958
    %v1960 = vpop.f32.mrb[0].mxu0
    %v1961 = vadd.f32 %v1607, %v1960
    %v1962 = vpop.f32.mrb[0].mxu0
    %v1963 = vadd.f32 %v1611, %v1962
    %1964 = vdwg.mxu0
    %v1965 = vmul.f32 %v1807, 0.2
    %v1966 = vmul.f32 %v1809, 0.2
    %v1967 = vmul.f32 %v1811, 0.2
    %v1968 = vmul.f32 %v1813, 0.2
    %v1969 = vmul.f32 %v1817, 0.2
    %v1970 = vmul.f32 %v1819, 0.2
    %v1971 = vmul.f32 %v1821, 0.2
    %v1972 = vmul.f32 %v1823, 0.2
    %v1973 = vmul.f32 %v1827, 0.2
    %v1974 = vmul.f32 %v1829, 0.2
    %v1975 = vmul.f32 %v1831, 0.2
    %v1976 = vmul.f32 %v1833, 0.2
    %v1977 = vmul.f32 %v1837, 0.2
    %v1978 = vmul.f32 %v1839, 0.2
    %v1979 = vmul.f32 %v1841, 0.2
    %v1980 = vmul.f32 %v1843, 0.2
    %v1981 = vmul.f32 %v1847, 0.2
    %v1982 = vmul.f32 %v1849, 0.2
    %v1983 = vmul.f32 %v1851, 0.2
    %v1984 = vmul.f32 %v1853, 0.2
    %v1985 = vmul.f32 %v1857, 0.2
    %v1986 = vmul.f32 %v1859, 0.2
    %v1987 = vmul.f32 %v1861, 0.2
    %v1988 = vmul.f32 %v1863, 0.2
    %v1989 = vmul.f32 %v1867, 0.2
    %v1990 = vmul.f32 %v1869, 0.2
    %v1991 = vmul.f32 %v1871, 0.2
    %v1992 = vmul.f32 %v1873, 0.2
    %v1993 = vmul.f32 %v1877, 0.2
    %v1994 = vmul.f32 %v1879, 0.2
    %v1995 = vmul.f32 %v1881, 0.2
    %v1996 = vmul.f32 %v1883, 0.2
    %v1997 = vmul.f32 %v1887, 0.2
    %v1998 = vmul.f32 %v1889, 0.2
    %v1999 = vmul.f32 %v1891, 0.2
    %v2000 = vmul.f32 %v1893, 0.2
    %v2001 = vmul.f32 %v1897, 0.2
    %v2002 = vmul.f32 %v1899, 0.2
    %v2003 = vmul.f32 %v1901, 0.2
    %v2004 = vmul.f32 %v1903, 0.2
    %v2005 = vmul.f32 %v1907, 0.2
    %v2006 = vmul.f32 %v1909, 0.2
    %v2007 = vmul.f32 %v1911, 0.2
    %v2008 = vmul.f32 %v1913, 0.2
    %v2009 = vmul.f32 %v1917, 0.2
    %v2010 = vmul.f32 %v1919, 0.2
    %v2011 = vmul.f32 %v1921, 0.2
    %v2012 = vmul.f32 %v1923, 0.2
    %v2013 = vmul.f32 %v1927, 0.2
    %v2014 = vmul.f32 %v1929, 0.2
    %v2015 = vmul.f32 %v1931, 0.2
    %v2016 = vmul.f32 %v1933, 0.2
    %v2017 = vmul.f32 %v1937, 0.2
    %v2018 = vmul.f32 %v1939, 0.2
    %v2019 = vmul.f32 %v1941, 0.2
    %v2020 = vmul.f32 %v1943, 0.2
    %v2021 = vmul.f32 %v1947, 0.2
    %v2022 = vmul.f32 %v1949, 0.2
    %v2023 = vmul.f32 %v1951, 0.2
    %v2024 = vmul.f32 %v1953, 0.2
    %v2025 = vmul.f32 %v1957, 0.2
    %v2026 = vmul.f32 %v1959, 0.2
    %v2027 = vmul.f32 %v1961, 0.2
    %v2028 = vmul.f32 %v1963, 0.2
    %v2029 = vmax.f32 %v1807, %v1965
    %v2030 = vmax.f32 %v1809, %v1966
    %v2031 = vmax.f32 %v1811, %v1967
    %v2032 = vmax.f32 %v1813, %v1968
    %v2033 = vmax.f32 %v1817, %v1969
    %v2034 = vmax.f32 %v1819, %v1970
    %v2035 = vmax.f32 %v1821, %v1971
    %v2036 = vmax.f32 %v1823, %v1972
    %v2037 = vmax.f32 %v1827, %v1973
    %v2038 = vmax.f32 %v1829, %v1974
    %v2039 = vmax.f32 %v1831, %v1975
    %v2040 = vmax.f32 %v1833, %v1976
    %v2041 = vmax.f32 %v1837, %v1977
    %v2042 = vmax.f32 %v1839, %v1978
    %v2043 = vmax.f32 %v1841, %v1979
    %v2044 = vmax.f32 %v1843, %v1980
    %v2045 = vmax.f32 %v1847, %v1981
    %v2046 = vmax.f32 %v1849, %v1982
    %v2047 = vmax.f32 %v1851, %v1983
    %v2048 = vmax.f32 %v1853, %v1984
    %v2049 = vmax.f32 %v1857, %v1985
    %v2050 = vmax.f32 %v1859, %v1986
    %v2051 = vmax.f32 %v1861, %v1987
    %v2052 = vmax.f32 %v1863, %v1988
    %v2053 = vmax.f32 %v1867, %v1989
    %v2054 = vmax.f32 %v1869, %v1990
    %v2055 = vmax.f32 %v1871, %v1991
    %v2056 = vmax.f32 %v1873, %v1992
    %v2057 = vmax.f32 %v1877, %v1993
    %v2058 = vmax.f32 %v1879, %v1994
    %v2059 = vmax.f32 %v1881, %v1995
    %v2060 = vmax.f32 %v1883, %v1996
    %v2061 = vmax.f32 %v1887, %v1997
    %v2062 = vmax.f32 %v1889, %v1998
    %v2063 = vmax.f32 %v1891, %v1999
    %v2064 = vmax.f32 %v1893, %v2000
    %v2065 = vmax.f32 %v1897, %v2001
    %v2066 = vmax.f32 %v1899, %v2002
    %v2067 = vmax.f32 %v1901, %v2003
    %v2068 = vmax.f32 %v1903, %v2004
    %v2069 = vmax.f32 %v1907, %v2005
    %v2070 = vmax.f32 %v1909, %v2006
    %v2071 = vmax.f32 %v1911, %v2007
    %v2072 = vmax.f32 %v1913, %v2008
    %v2073 = vmax.f32 %v1917, %v2009
    %v2074 = vmax.f32 %v1919, %v2010
    %v2075 = vmax.f32 %v1921, %v2011
    %v2076 = vmax.f32 %v1923, %v2012
    %v2077 = vmax.f32 %v1927, %v2013
    %v2078 = vmax.f32 %v1929, %v2014
    %v2079 = vmax.f32 %v1931, %v2015
    %v2080 = vmax.f32 %v1933, %v2016
    %v2081 = vmax.f32 %v1937, %v2017
    %v2082 = vmax.f32 %v1939, %v2018
    %v2083 = vmax.f32 %v1941, %v2019
    %v2084 = vmax.f32 %v1943, %v2020
    %v2085 = vmax.f32 %v1947, %v2021
    %v2086 = vmax.f32 %v1949, %v2022
    %v2087 = vmax.f32 %v1951, %v2023
    %v2088 = vmax.f32 %v1953, %v2024
    %v2089 = vmax.f32 %v1957, %v2025
    %v2090 = vmax.f32 %v1959, %v2026
    %v2091 = vmax.f32 %v1961, %v2027
    %v2092 = vmax.f32 %v1963, %v2028
    %v2093 = vadd.f32 %v2029, %v2031
    %v2094 = vadd.f32 %v2093, %v2033
    %v2095 = vadd.f32 %v2094, %v2035
    %v2096 = vadd.f32 %v2095, %v2037
    %v2097 = vadd.f32 %v2096, %v2039
    %v2098 = vadd.f32 %v2097, %v2041
    %v2099 = vadd.f32 %v2098, %v2043
    %v2100 = vadd.f32 %v2099, %v2045
    %v2101 = vadd.f32 %v2100, %v2047
    %v2102 = vadd.f32 %v2101, %v2049
    %v2103 = vadd.f32 %v2102, %v2051
    %v2104 = vadd.f32 %v2103, %v2053
    %v2105 = vadd.f32 %v2104, %v2055
    %v2106 = vadd.f32 %v2105, %v2057
    %v2107 = vadd.f32 %v2106, %v2059
    %v2108 = vadd.f32 %v2107, %v2061
    %v2109 = vadd.f32 %v2108, %v2063
    %v2110 = vadd.f32 %v2109, %v2065
    %v2111 = vadd.f32 %v2110, %v2067
    %v2112 = vadd.f32 %v2111, %v2069
    %v2113 = vadd.f32 %v2112, %v2071
    %v2114 = vadd.f32 %v2113, %v2073
    %v2115 = vadd.f32 %v2114, %v2075
    %v2116 = vadd.f32 %v2115, %v2077
    %v2117 = vadd.f32 %v2116, %v2079
    %v2118 = vadd.f32 %v2117, %v2081
    %v2119 = vadd.f32 %v2118, %v2083
    %v2120 = vadd.f32 %v2119, %v2085
    %v2121 = vadd.f32 %v2120, %v2087
    %v2122 = vadd.f32 %v2121, %v2089
    %v2123 = vadd.f32 %v2122, %v2091
    %v2124 = vrot.slane %v2123, 4
    %v2125 = vadd.f32 %v2123, %v2124
    %v2126 = vrot.slane %v2125, 2
    %v2127 = vadd.f32 %v2125, %v2126
    %v2128 = vrot.slane %v2127, 1
    %v2129 = vadd.f32 %v2127, %v2128
    %v2130 = vadd.f32 %v2030, %v2032
    %v2131 = vadd.f32 %v2130, %v2034
    %v2132 = vadd.f32 %v2131, %v2036
    %v2133 = vadd.f32 %v2132, %v2038
    %v2134 = vadd.f32 %v2133, %v2040
    %v2135 = vadd.f32 %v2134, %v2042
    %v2136 = vadd.f32 %v2135, %v2044
    %v2137 = vadd.f32 %v2136, %v2046
    %v2138 = vadd.f32 %v2137, %v2048
    %v2139 = vadd.f32 %v2138, %v2050
    %v2140 = vadd.f32 %v2139, %v2052
    %v2141 = vadd.f32 %v2140, %v2054
    %v2142 = vadd.f32 %v2141, %v2056
    %v2143 = vadd.f32 %v2142, %v2058
    %v2144 = vadd.f32 %v2143, %v2060
    %v2145 = vadd.f32 %v2144, %v2062
    %v2146 = vadd.f32 %v2145, %v2064
    %v2147 = vadd.f32 %v2146, %v2066
    %v2148 = vadd.f32 %v2147, %v2068
    %v2149 = vadd.f32 %v2148, %v2070
    %v2150 = vadd.f32 %v2149, %v2072
    %v2151 = vadd.f32 %v2150, %v2074
    %v2152 = vadd.f32 %v2151, %v2076
    %v2153 = vadd.f32 %v2152, %v2078
    %v2154 = vadd.f32 %v2153, %v2080
    %v2155 = vadd.f32 %v2154, %v2082
    %v2156 = vadd.f32 %v2155, %v2084
    %v2157 = vadd.f32 %v2156, %v2086
    %v2158 = vadd.f32 %v2157, %v2088
    %v2159 = vadd.f32 %v2158, %v2090
    %v2160 = vadd.f32 %v2159, %v2092
    %v2161 = vrot.slane %v2160, 4
    %v2162 = vadd.f32 %v2160, %v2161
    %v2163 = vrot.slane %v2162, 2
    %v2164 = vadd.f32 %v2162, %v2163
    %v2165 = vrot.slane %v2164, 1
    %v2166 = vadd.f32 %v2164, %v2165
    %v2167 = vmul.f32 %v2129, 0.00390625
    %v2168 = vmul.f32 %v2166, 0.00390625
    %v2169 = vsub.f32 %v2029, %v2167
    %v2170 = vsub.f32 %v2030, %v2168
    %v2171 = vsub.f32 %v2031, %v2167
    %v2172 = vsub.f32 %v2032, %v2168
    %v2173 = vsub.f32 %v2033, %v2167
    %v2174 = vsub.f32 %v2034, %v2168
    %v2175 = vsub.f32 %v2035, %v2167
    %v2176 = vsub.f32 %v2036, %v2168
    %v2177 = vsub.f32 %v2037, %v2167
    %v2178 = vsub.f32 %v2038, %v2168
    %v2179 = vsub.f32 %v2039, %v2167
    %v2180 = vsub.f32 %v2040, %v2168
    %v2181 = vsub.f32 %v2041, %v2167
    %v2182 = vsub.f32 %v2042, %v2168
    %v2183 = vsub.f32 %v2043, %v2167
    %v2184 = vsub.f32 %v2044, %v2168
    %v2185 = vsub.f32 %v2045, %v2167
    %v2186 = vsub.f32 %v2046, %v2168
    %v2187 = vsub.f32 %v2047, %v2167
    %v2188 = vsub.f32 %v2048, %v2168
    %v2189 = vsub.f32 %v2049, %v2167
    %v2190 = vsub.f32 %v2050, %v2168
    %v2191 = vsub.f32 %v2051, %v2167
    %v2192 = vsub.f32 %v2052, %v2168
    %v2193 = vsub.f32 %v2053, %v2167
    %v2194 = vsub.f32 %v2054, %v2168
    %v2195 = vsub.f32 %v2055, %v2167
    %v2196 = vsub.f32 %v2056, %v2168
    %v2197 = vsub.f32 %v2057, %v2167
    %v2198 = vsub.f32 %v2058, %v2168
    %v2199 = vsub.f32 %v2059, %v2167
    %v2200 = vsub.f32 %v2060, %v2168
    %v2201 = vsub.f32 %v2061, %v2167
    %v2202 = vsub.f32 %v2062, %v2168
    %v2203 = vsub.f32 %v2063, %v2167
    %v2204 = vsub.f32 %v2064, %v2168
    %v2205 = vsub.f32 %v2065, %v2167
    %v2206 = vsub.f32 %v2066, %v2168
    %v2207 = vsub.f32 %v2067, %v2167
    %v2208 = vsub.f32 %v2068, %v2168
    %v2209 = vsub.f32 %v2069, %v2167
    %v2210 = vsub.f32 %v2070, %v2168
    %v2211 = vsub.f32 %v2071, %v2167
    %v2212 = vsub.f32 %v2072, %v2168
    %v2213 = vsub.f32 %v2073, %v2167
    %v2214 = vsub.f32 %v2074, %v2168
    %v2215 = vsub.f32 %v2075, %v2167
    %v2216 = vsub.f32 %v2076, %v2168
    %v2217 = vsub.f32 %v2077, %v2167
    %v2218 = vsub.f32 %v2078, %v2168
    %v2219 = vsub.f32 %v2079, %v2167
    %v2220 = vsub.f32 %v2080, %v2168
    %v2221 = vsub.f32 %v2081, %v2167
    %v2222 = vsub.f32 %v2082, %v2168
    %v2223 = vsub.f32 %v2083, %v2167
    %v2224 = vsub.f32 %v2084, %v2168
    %v2225 = vsub.f32 %v2085, %v2167
    %v2226 = vsub.f32 %v2086, %v2168
    %v2227 = vsub.f32 %v2087, %v2167
    %v2228 = vsub.f32 %v2088, %v2168
    %v2229 = vsub.f32 %v2089, %v2167
    %v2230 = vsub.f32 %v2090, %v2168
    %v2231 = vsub.f32 %v2091, %v2167
    %v2232 = vsub.f32 %v2092, %v2168
    %v2233 = vmul.f32 %v2169, %v2169
    %v2234 = vmul.f32 %v2170, %v2170
    %v2235 = vmul.f32 %v2171, %v2171
    %v2236 = vmul.f32 %v2172, %v2172
    %v2237 = vmul.f32 %v2173, %v2173
    %v2238 = vmul.f32 %v2174, %v2174
    %v2239 = vmul.f32 %v2175, %v2175
    %v2240 = vmul.f32 %v2176, %v2176
    %v2241 = vmul.f32 %v2177, %v2177
    %v2242 = vmul.f32 %v2178, %v2178
    %v2243 = vmul.f32 %v2179, %v2179
    %v2244 = vmul.f32 %v2180, %v2180
    %v2245 = vmul.f32 %v2181, %v2181
    %v2246 = vmul.f32 %v2182, %v2182
    %v2247 = vmul.f32 %v2183, %v2183
    %v2248 = vmul.f32 %v2184, %v2184
    %v2249 = vmul.f32 %v2185, %v2185
    %v2250 = vmul.f32 %v2186, %v2186
    %v2251 = vmul.f32 %v2187, %v2187
    %v2252 = vmul.f32 %v2188, %v2188
    %v2253 = vmul.f32 %v2189, %v2189
    %v2254 = vmul.f32 %v2190, %v2190
    %v2255 = vmul.f32 %v2191, %v2191
    %v2256 = vmul.f32 %v2192, %v2192
    %v2257 = vmul.f32 %v2193, %v2193
    %v2258 = vmul.f32 %v2194, %v2194
    %v2259 = vmul.f32 %v2195, %v2195
    %v2260 = vmul.f32 %v2196, %v2196
    %v2261 = vmul.f32 %v2197, %v2197
    %v2262 = vmul.f32 %v2198, %v2198
    %v2263 = vmul.f32 %v2199, %v2199
    %v2264 = vmul.f32 %v2200, %v2200
    %v2265 = vmul.f32 %v2201, %v2201
    %v2266 = vmul.f32 %v2202, %v2202
    %v2267 = vmul.f32 %v2203, %v2203
    %v2268 = vmul.f32 %v2204, %v2204
    %v2269 = vmul.f32 %v2205, %v2205
    %v2270 = vmul.f32 %v2206, %v2206
    %v2271 = vmul.f32 %v2207, %v2207
    %v2272 = vmul.f32 %v2208, %v2208
    %v2273 = vmul.f32 %v2209, %v2209
    %v2274 = vmul.f32 %v2210, %v2210
    %v2275 = vmul.f32 %v2211, %v2211
    %v2276 = vmul.f32 %v2212, %v2212
    %v2277 = vmul.f32 %v2213, %v2213
    %v2278 = vmul.f32 %v2214, %v2214
    %v2279 = vmul.f32 %v2215, %v2215
    %v2280 = vmul.f32 %v2216, %v2216
    %v2281 = vmul.f32 %v2217, %v2217
    %v2282 = vmul.f32 %v2218, %v2218
    %v2283 = vmul.f32 %v2219, %v2219
    %v2284 = vmul.f32 %v2220, %v2220
    %v2285 = vmul.f32 %v2221, %v2221
    %v2286 = vmul.f32 %v2222, %v2222
    %v2287 = vmul.f32 %v2223, %v2223
    %v2288 = vmul.f32 %v2224, %v2224
    %v2289 = vmul.f32 %v2225, %v2225
    %v2290 = vmul.f32 %v2226, %v2226
    %v2291 = vmul.f32 %v2227, %v2227
    %v2292 = vmul.f32 %v2228, %v2228
    %v2293 = vmul.f32 %v2229, %v2229
    %v2294 = vmul.f32 %v2230, %v2230
    %v2295 = vmul.f32 %v2231, %v2231
    %v2296 = vmul.f32 %v2232, %v2232
    %v2297 = vadd.f32 %v2233, %v2235
    %v2298 = vadd.f32 %v2297, %v2237
    %v2299 = vadd.f32 %v2298, %v2239
    %v2300 = vadd.f32 %v2299, %v2241
    %v2301 = vadd.f32 %v2300, %v2243
    %v2302 = vadd.f32 %v2301, %v2245
    %v2303 = vadd.f32 %v2302, %v2247
    %v2304 = vadd.f32 %v2303, %v2249
    %v2305 = vadd.f32 %v2304, %v2251
    %v2306 = vadd.f32 %v2305, %v2253
    %v2307 = vadd.f32 %v2306, %v2255
    %v2308 = vadd.f32 %v2307, %v2257
    %v2309 = vadd.f32 %v2308, %v2259
    %v2310 = vadd.f32 %v2309, %v2261
    %v2311 = vadd.f32 %v2310, %v2263
    %v2312 = vadd.f32 %v2311, %v2265
    %v2313 = vadd.f32 %v2312, %v2267
    %v2314 = vadd.f32 %v2313, %v2269
    %v2315 = vadd.f32 %v2314, %v2271
    %v2316 = vadd.f32 %v2315, %v2273
    %v2317 = vadd.f32 %v2316, %v2275
    %v2318 = vadd.f32 %v2317, %v2277
    %v2319 = vadd.f32 %v2318, %v2279
    %v2320 = vadd.f32 %v2319, %v2281
    %v2321 = vadd.f32 %v2320, %v2283
    %v2322 = vadd.f32 %v2321, %v2285
    %v2323 = vadd.f32 %v2322, %v2287
    %v2324 = vadd.f32 %v2323, %v2289
    %v2325 = vadd.f32 %v2324, %v2291
    %v2326 = vadd.f32 %v2325, %v2293
    %v2327 = vadd.f32 %v2326, %v2295
    %v2328 = vrot.slane %v2327, 4
    %v2329 = vadd.f32 %v2327, %v2328
    %v2330 = vrot.slane %v2329, 2
    %v2331 = vadd.f32 %v2329, %v2330
    %v2332 = vrot.slane %v2331, 1
    %v2333 = vadd.f32 %v2331, %v2332
    %v2334 = vadd.f32 %v2234, %v2236
    %v2335 = vadd.f32 %v2334, %v2238
    %v2336 = vadd.f32 %v2335, %v2240
    %v2337 = vadd.f32 %v2336, %v2242
    %v2338 = vadd.f32 %v2337, %v2244
    %v2339 = vadd.f32 %v2338, %v2246
    %v2340 = vadd.f32 %v2339, %v2248
    %v2341 = vadd.f32 %v2340, %v2250
    %v2342 = vadd.f32 %v2341, %v2252
    %v2343 = vadd.f32 %v2342, %v2254
    %v2344 = vadd.f32 %v2343, %v2256
    %v2345 = vadd.f32 %v2344, %v2258
    %v2346 = vadd.f32 %v2345, %v2260
    %v2347 = vadd.f32 %v2346, %v2262
    %v2348 = vadd.f32 %v2347, %v2264
    %v2349 = vadd.f32 %v2348, %v2266
    %v2350 = vadd.f32 %v2349, %v2268
    %v2351 = vadd.f32 %v2350, %v2270
    %v2352 = vadd.f32 %v2351, %v2272
    %v2353 = vadd.f32 %v2352, %v2274
    %v2354 = vadd.f32 %v2353, %v2276
    %v2355 = vadd.f32 %v2354, %v2278
    %v2356 = vadd.f32 %v2355, %v2280
    %v2357 = vadd.f32 %v2356, %v2282
    %v2358 = vadd.f32 %v2357, %v2284
    %v2359 = vadd.f32 %v2358, %v2286
    %v2360 = vadd.f32 %v2359, %v2288
    %v2361 = vadd.f32 %v2360, %v2290
    %v2362 = vadd.f32 %v2361, %v2292
    %v2363 = vadd.f32 %v2362, %v2294
    %v2364 = vadd.f32 %v2363, %v2296
    %v2365 = vrot.slane %v2364, 4
    %v2366 = vadd.f32 %v2364, %v2365
    %v2367 = vrot.slane %v2366, 2
    %v2368 = vadd.f32 %v2366, %v2367
    %v2369 = vrot.slane %v2368, 1
    %v2370 = vadd.f32 %v2368, %v2369
    %v2371 = vmul.f32 %v2333, 0.00390625
    %v2372 = vmul.f32 %v2370, 0.00390625
    %v2373 = vadd.f32 %v2371, 1e-05
    %v2374 = vadd.f32 %v2372, 1e-05
    %v2375 = vrsqrt.pop %v2373
    %v2376 = vrsqrt.pop %v2374
    %v2379 = vcombine.low %v2375, %v2376
    %v2380 = vrot.slane %v2379, 7
    %v2382 = vmul.f32 %v1528, %v2380
    %v2384 = vlaneseq
    %v2385 = vshrl.u32 %v2384, 7
    %v2386 = vsub.s32 1, %v2385
    %v2387 = vrot.slane %v2382, %v2386
    %v2388 = vlaneseq
    %v2389 = vshrl.u32 %v2388, 7
    %v2390 = vsub.s32 5, %v2389
    %v2391 = vrot.slane %v2382, %v2390
    %v2394 = vlaneseq
    %v2395 = vshrl.u32 %v2394, 7
    %v2396 = vsub.s32 1, %v2395
    %v2397 = vrot.slane %v2387, %v2396
    %v2398 = vlaneseq
    %v2399 = vshrl.u32 %v2398, 7
    %v2400 = vsub.s32 1, %v2399
    %v2401 = vrot.slane %v2391, %v2400
    %v2402 = vmul.f32 %v2169, %v2397
    %v2403 = vmul.f32 %v2170, %v2401
    %v2404 = vmul.f32 %v2171, %v2397
    %v2405 = vmul.f32 %v2172, %v2401
    %v2406 = vmul.f32 %v2173, %v2397
    %v2407 = vmul.f32 %v2174, %v2401
    %v2408 = vmul.f32 %v2175, %v2397
    %v2409 = vmul.f32 %v2176, %v2401
    %v2410 = vmul.f32 %v2177, %v2397
    %v2411 = vmul.f32 %v2178, %v2401
    %v2412 = vmul.f32 %v2179, %v2397
    %v2413 = vmul.f32 %v2180, %v2401
    %v2414 = vmul.f32 %v2181, %v2397
    %v2415 = vmul.f32 %v2182, %v2401
    %v2416 = vmul.f32 %v2183, %v2397
    %v2417 = vmul.f32 %v2184, %v2401
    %v2418 = vmul.f32 %v2185, %v2397
    %v2419 = vmul.f32 %v2186, %v2401
    %v2420 = vmul.f32 %v2187, %v2397
    %v2421 = vmul.f32 %v2188, %v2401
    %v2422 = vmul.f32 %v2189, %v2397
    %v2423 = vmul.f32 %v2190, %v2401
    %v2424 = vmul.f32 %v2191, %v2397
    %v2425 = vmul.f32 %v2192, %v2401
    %v2426 = vmul.f32 %v2193, %v2397
    %v2427 = vmul.f32 %v2194, %v2401
    %v2428 = vmul.f32 %v2195, %v2397
    %v2429 = vmul.f32 %v2196, %v2401
    %v2430 = vmul.f32 %v2197, %v2397
    %v2431 = vmul.f32 %v2198, %v2401
    %v2432 = vmul.f32 %v2199, %v2397
    %v2433 = vmul.f32 %v2200, %v2401
    %v2434 = vmul.f32 %v2201, %v2397
    %v2435 = vmul.f32 %v2202, %v2401
    %v2436 = vmul.f32 %v2203, %v2397
    %v2437 = vmul.f32 %v2204, %v2401
    %v2438 = vmul.f32 %v2205, %v2397
    %v2439 = vmul.f32 %v2206, %v2401
    %v2440 = vmul.f32 %v2207, %v2397
    %v2441 = vmul.f32 %v2208, %v2401
    %v2442 = vmul.f32 %v2209, %v2397
    %v2443 = vmul.f32 %v2210, %v2401
    %v2444 = vmul.f32 %v2211, %v2397
    %v2445 = vmul.f32 %v2212, %v2401
    %v2446 = vmul.f32 %v2213, %v2397
    %v2447 = vmul.f32 %v2214, %v2401
    %v2448 = vmul.f32 %v2215, %v2397
    %v2449 = vmul.f32 %v2216, %v2401
    %v2450 = vmul.f32 %v2217, %v2397
    %v2451 = vmul.f32 %v2218, %v2401
    %v2452 = vmul.f32 %v2219, %v2397
    %v2453 = vmul.f32 %v2220, %v2401
    %v2454 = vmul.f32 %v2221, %v2397
    %v2455 = vmul.f32 %v2222, %v2401
    %v2456 = vmul.f32 %v2223, %v2397
    %v2457 = vmul.f32 %v2224, %v2401
    %v2458 = vmul.f32 %v2225, %v2397
    %v2459 = vmul.f32 %v2226, %v2401
    %v2460 = vmul.f32 %v2227, %v2397
    %v2461 = vmul.f32 %v2228, %v2401
    %v2462 = vmul.f32 %v2229, %v2397
    %v2463 = vmul.f32 %v2230, %v2401
    %v2464 = vmul.f32 %v2231, %v2397
    %v2465 = vmul.f32 %v2232, %v2401
    %v2466 = vlaneseq
    %v2467 = vshrl.u32 %v2466, 7
    %v2468 = vsub.s32 2, %v2467
    %v2469 = vrot.slane %v1528, %v2468
    %v2470 = vlaneseq
    %v2471 = vshrl.u32 %v2470, 7
    %v2472 = vsub.s32 6, %v2471
    %v2473 = vrot.slane %v1528, %v2472
    %v2476 = vlaneseq
    %v2477 = vshrl.u32 %v2476, 7
    %v2478 = vsub.s32 2, %v2477
    %v2479 = vrot.slane %v2469, %v2478
    %v2480 = vlaneseq
    %v2481 = vshrl.u32 %v2480, 7
    %v2482 = vsub.s32 2, %v2481
    %v2483 = vrot.slane %v2473, %v2482
    %v2484 = vadd.f32 %v2402, %v2479
    %v2485 = vadd.f32 %v2403, %v2483
    %v2486 = vadd.f32 %v2404, %v2479
    %v2487 = vadd.f32 %v2405, %v2483
    %v2488 = vadd.f32 %v2406, %v2479
    %v2489 = vadd.f32 %v2407, %v2483
    %v2490 = vadd.f32 %v2408, %v2479
    %v2491 = vadd.f32 %v2409, %v2483
    %v2492 = vadd.f32 %v2410, %v2479
    %v2493 = vadd.f32 %v2411, %v2483
    %v2494 = vadd.f32 %v2412, %v2479
    %v2495 = vadd.f32 %v2413, %v2483
    %v2496 = vadd.f32 %v2414, %v2479
    %v2497 = vadd.f32 %v2415, %v2483
    %v2498 = vadd.f32 %v2416, %v2479
    %v2499 = vadd.f32 %v2417, %v2483
    %v2500 = vadd.f32 %v2418, %v2479
    %v2501 = vadd.f32 %v2419, %v2483
    %v2502 = vadd.f32 %v2420, %v2479
    %v2503 = vadd.f32 %v2421, %v2483
    %v2504 = vadd.f32 %v2422, %v2479
    %v2505 = vadd.f32 %v2423, %v2483
    %v2506 = vadd.f32 %v2424, %v2479
    %v2507 = vadd.f32 %v2425, %v2483
    %v2508 = vadd.f32 %v2426, %v2479
    %v2509 = vadd.f32 %v2427, %v2483
    %v2510 = vadd.f32 %v2428, %v2479
    %v2511 = vadd.f32 %v2429, %v2483
    %v2512 = vadd.f32 %v2430, %v2479
    %v2513 = vadd.f32 %v2431, %v2483
    %v2514 = vadd.f32 %v2432, %v2479
    %v2515 = vadd.f32 %v2433, %v2483
    %v2516 = vadd.f32 %v2434, %v2479
    %v2517 = vadd.f32 %v2435, %v2483
    %v2518 = vadd.f32 %v2436, %v2479
    %v2519 = vadd.f32 %v2437, %v2483
    %v2520 = vadd.f32 %v2438, %v2479
    %v2521 = vadd.f32 %v2439, %v2483
    %v2522 = vadd.f32 %v2440, %v2479
    %v2523 = vadd.f32 %v2441, %v2483
    %v2524 = vadd.f32 %v2442, %v2479
    %v2525 = vadd.f32 %v2443, %v2483
    %v2526 = vadd.f32 %v2444, %v2479
    %v2527 = vadd.f32 %v2445, %v2483
    %v2528 = vadd.f32 %v2446, %v2479
    %v2529 = vadd.f32 %v2447, %v2483
    %v2530 = vadd.f32 %v2448, %v2479
    %v2531 = vadd.f32 %v2449, %v2483
    %v2532 = vadd.f32 %v2450, %v2479
    %v2533 = vadd.f32 %v2451, %v2483
    %v2534 = vadd.f32 %v2452, %v2479
    %v2535 = vadd.f32 %v2453, %v2483
    %v2536 = vadd.f32 %v2454, %v2479
    %v2537 = vadd.f32 %v2455, %v2483
    %v2538 = vadd.f32 %v2456, %v2479
    %v2539 = vadd.f32 %v2457, %v2483
    %v2540 = vadd.f32 %v2458, %v2479
    %v2541 = vadd.f32 %v2459, %v2483
    %v2542 = vadd.f32 %v2460, %v2479
    %v2543 = vadd.f32 %v2461, %v2483
    %v2544 = vadd.f32 %v2462, %v2479
    %v2545 = vadd.f32 %v2463, %v2483
    %v2546 = vadd.f32 %v2464, %v2479
    %v2547 = vadd.f32 %v2465, %v2483
    %v2548 = vpack.c.bf16 %v2486, %v2484
    %v2549 = vpack.c.bf16 %v2487, %v2485
    %v2550 = vpack.c.bf16 %v2490, %v2488
    %v2551 = vpack.c.bf16 %v2491, %v2489
    %v2552 = vpack.c.bf16 %v2494, %v2492
    %v2553 = vpack.c.bf16 %v2495, %v2493
    %v2554 = vpack.c.bf16 %v2498, %v2496
    %v2555 = vpack.c.bf16 %v2499, %v2497
    %v2556 = vpack.c.bf16 %v2502, %v2500
    %v2557 = vpack.c.bf16 %v2503, %v2501
    %v2558 = vpack.c.bf16 %v2506, %v2504
    %v2559 = vpack.c.bf16 %v2507, %v2505
    %v2560 = vpack.c.bf16 %v2510, %v2508
    %v2561 = vpack.c.bf16 %v2511, %v2509
    %v2562 = vpack.c.bf16 %v2514, %v2512
    %v2563 = vpack.c.bf16 %v2515, %v2513
    %v2564 = vpack.c.bf16 %v2518, %v2516
    %v2565 = vpack.c.bf16 %v2519, %v2517
    %v2566 = vpack.c.bf16 %v2522, %v2520
    %v2567 = vpack.c.bf16 %v2523, %v2521
    %v2568 = vpack.c.bf16 %v2526, %v2524
    %v2569 = vpack.c.bf16 %v2527, %v2525
    %v2570 = vpack.c.bf16 %v2530, %v2528
    %v2571 = vpack.c.bf16 %v2531, %v2529
    %v2572 = vpack.c.bf16 %v2534, %v2532
    %v2573 = vpack.c.bf16 %v2535, %v2533
    %v2574 = vpack.c.bf16 %v2538, %v2536
    %v2575 = vpack.c.bf16 %v2539, %v2537
    %v2576 = vpack.c.bf16 %v2542, %v2540
    %v2577 = vpack.c.bf16 %v2543, %v2541
    %v2578 = vpack.c.bf16 %v2546, %v2544
    %v2579 = vpack.c.bf16 %v2547, %v2545
    %v2580 = vld [vmem:[#allocation5] sm:$0xf]
    %v2581 = vld [vmem:[#allocation5 + $0x4] sm:$0xf]
    %v2582 = vld [vmem:[#allocation5 + $0x8] sm:$0xf]
    %v2583 = vld [vmem:[#allocation5 + $0xc] sm:$0xf]
    %v2584 = vld [vmem:[#allocation5 + $0x10] sm:$0xf]
    %v2585 = vld [vmem:[#allocation5 + $0x14] sm:$0xf]
    %v2586 = vld [vmem:[#allocation5 + $0x18] sm:$0xf]
    %v2587 = vld [vmem:[#allocation5 + $0x1c] sm:$0xf]
    %v2588 = vld [vmem:[#allocation5 + $0x20] sm:$0xf]
    %v2589 = vld [vmem:[#allocation5 + $0x24] sm:$0xf]
    %v2590 = vld [vmem:[#allocation5 + $0x28] sm:$0xf]
    %v2591 = vld [vmem:[#allocation5 + $0x2c] sm:$0xf]
    %v2592 = vld [vmem:[#allocation5 + $0x30] sm:$0xf]
    %v2593 = vld [vmem:[#allocation5 + $0x34] sm:$0xf]
    %v2594 = vld [vmem:[#allocation5 + $0x38] sm:$0xf]
    %v2595 = vld [vmem:[#allocation5 + $0x3c] sm:$0xf]
    %v2596 = vld [vmem:[#allocation5 + $0x40] sm:$0xf]
    %v2597 = vld [vmem:[#allocation5 + $0x44] sm:$0xf]
    %v2598 = vld [vmem:[#allocation5 + $0x48] sm:$0xf]
    %v2599 = vld [vmem:[#allocation5 + $0x4c] sm:$0xf]
    %v2600 = vld [vmem:[#allocation5 + $0x50] sm:$0xf]
    %v2601 = vld [vmem:[#allocation5 + $0x54] sm:$0xf]
    %v2602 = vld [vmem:[#allocation5 + $0x58] sm:$0xf]
    %v2603 = vld [vmem:[#allocation5 + $0x5c] sm:$0xf]
    %v2604 = vld [vmem:[#allocation5 + $0x60] sm:$0xf]
    %v2605 = vld [vmem:[#allocation5 + $0x64] sm:$0xf]
    %v2606 = vld [vmem:[#allocation5 + $0x68] sm:$0xf]
    %v2607 = vld [vmem:[#allocation5 + $0x6c] sm:$0xf]
    %v2608 = vld [vmem:[#allocation5 + $0x70] sm:$0xf]
    %v2609 = vld [vmem:[#allocation5 + $0x74] sm:$0xf]
    %v2610 = vld [vmem:[#allocation5 + $0x78] sm:$0xf]
    %v2611 = vld [vmem:[#allocation5 + $0x7c] sm:$0xf]
    %v2612 = vld [vmem:[%s8] sm:$0x1]
    %v2614 = vlaneseq
    %v2615 = vshrl.u32 %v2614, 7
    %v2616 = vsub.s32 0, %v2615
    %v2617 = vrot.slane %v2612, %v2616
    %v2651 = vunpack.c.l.b16 %v2580
    %v2652 = vunpack.c.l.b16 %v2581
    %v2653 = vunpack.c.l.b16 %v2582
    %v2654 = vunpack.c.l.b16 %v2583
    %v2655 = vunpack.c.l.b16 %v2584
    %v2656 = vunpack.c.l.b16 %v2585
    %v2657 = vunpack.c.l.b16 %v2586
    %v2658 = vunpack.c.l.b16 %v2587
    %v2659 = vunpack.c.l.b16 %v2588
    %v2660 = vunpack.c.l.b16 %v2589
    %v2661 = vunpack.c.l.b16 %v2590
    %v2662 = vunpack.c.l.b16 %v2591
    %v2663 = vunpack.c.l.b16 %v2592
    %v2664 = vunpack.c.l.b16 %v2593
    %v2665 = vunpack.c.l.b16 %v2594
    %v2666 = vunpack.c.l.b16 %v2595
    %v2667 = vunpack.c.l.b16 %v2596
    %v2668 = vunpack.c.l.b16 %v2597
    %v2669 = vunpack.c.l.b16 %v2598
    %v2670 = vunpack.c.l.b16 %v2599
    %v2671 = vunpack.c.l.b16 %v2600
    %v2672 = vunpack.c.l.b16 %v2601
    %v2673 = vunpack.c.l.b16 %v2602
    %v2674 = vunpack.c.l.b16 %v2603
    %v2675 = vunpack.c.l.b16 %v2604
    %v2676 = vunpack.c.l.b16 %v2605
    %v2677 = vunpack.c.l.b16 %v2606
    %v2678 = vunpack.c.l.b16 %v2607
    %v2679 = vunpack.c.l.b16 %v2608
    %v2680 = vunpack.c.l.b16 %v2609
    %v2681 = vunpack.c.l.b16 %v2610
    %v2682 = vunpack.c.l.b16 %v2611
    %v2683 = vpack.c.b16 %v2652, %v2651
    %v2684 = vpack.c.b16 %v2654, %v2653
    %v2685 = vpack.c.b16 %v2656, %v2655
    %v2686 = vpack.c.b16 %v2658, %v2657
    %v2687 = vpack.c.b16 %v2660, %v2659
    %v2688 = vpack.c.b16 %v2662, %v2661
    %v2689 = vpack.c.b16 %v2664, %v2663
    %v2690 = vpack.c.b16 %v2666, %v2665
    %v2691 = vpack.c.b16 %v2668, %v2667
    %v2692 = vpack.c.b16 %v2670, %v2669
    %v2693 = vpack.c.b16 %v2672, %v2671
    %v2694 = vpack.c.b16 %v2674, %v2673
    %v2695 = vpack.c.b16 %v2676, %v2675
    %v2696 = vpack.c.b16 %v2678, %v2677
    %v2697 = vpack.c.b16 %v2680, %v2679
    %v2698 = vpack.c.b16 %v2682, %v2681
    %2715 = vmatprep.subr.bf16.mxu0 0
    %2716 = vmatpush1.bf16.msra.mxu0 %v2683
    %2717 = vmatprep.subr.bf16.mxu0 0
    %2718 = vmatpush1.bf16.msra.mxu0 %v2684
    %2719 = vmatprep.subr.bf16.mxu0 0
    %2720 = vmatpush1.bf16.msra.mxu0 %v2685
    %2721 = vmatprep.subr.bf16.mxu0 0
    %2722 = vmatpush1.bf16.msra.mxu0 %v2686
    %2723 = vmatprep.subr.bf16.mxu0 0
    %2724 = vmatpush1.bf16.msra.mxu0 %v2687
    %2725 = vmatprep.subr.bf16.mxu0 0
    %2726 = vmatpush1.bf16.msra.mxu0 %v2688
    %2727 = vmatprep.subr.bf16.mxu0 0
    %2728 = vmatpush1.bf16.msra.mxu0 %v2689
    %2729 = vmatprep.subr.bf16.mxu0 0
    %2730 = vmatpush1.bf16.msra.mxu0 %v2690
    %2731 = vmatprep.subr.bf16.mxu0 0
    %2732 = vmatpush1.bf16.msra.mxu0 %v2691
    %2733 = vmatprep.subr.bf16.mxu0 0
    %2734 = vmatpush1.bf16.msra.mxu0 %v2692
    %2735 = vmatprep.subr.bf16.mxu0 0
    %2736 = vmatpush1.bf16.msra.mxu0 %v2693
    %2737 = vmatprep.subr.bf16.mxu0 0
    %2738 = vmatpush1.bf16.msra.mxu0 %v2694
    %2739 = vmatprep.subr.bf16.mxu0 0
    %2740 = vmatpush1.bf16.msra.mxu0 %v2695
    %2741 = vmatprep.subr.bf16.mxu0 0
    %2742 = vmatpush1.bf16.msra.mxu0 %v2696
    %2743 = vmatprep.subr.bf16.mxu0 0
    %2744 = vmatpush1.bf16.msra.mxu0 %v2697
    %2745 = vmatprep.subr.bf16.mxu0 0
    %2746 = vmatpush1.bf16.msra.mxu0 %v2698
    %2747 = vmatprep.mubr.bf16.mxu0 %v2549
    %2748 = vmatmul.mubr.bf16.gmra.mrb[0].mxu0 %v2548
    %v2749 = vpop.f32.mrb[0].mxu0
    %v2750 = vadd.f32 %v2617, %v2749
    %v2751 = vpop.f32.mrb[0].mxu0
    %v2752 = vpop.f32.mrb[0].mxu0
    %v2753 = vadd.f32 %v2617, %v2752
    %v2754 = vpop.f32.mrb[0].mxu0
    %2755 = vmatprep.mubr.bf16.mxu0 %v2551
    %2756 = vmatmul.mubr.bf16.gmra.mrb[0].mxu0 %v2550
    %v2757 = vpop.f32.mrb[0].mxu0
    %v2758 = vadd.f32 %v2617, %v2757
    %v2759 = vpop.f32.mrb[0].mxu0
    %v2760 = vpop.f32.mrb[0].mxu0
    %v2761 = vadd.f32 %v2617, %v2760
    %v2762 = vpop.f32.mrb[0].mxu0
    %2763 = vmatprep.mubr.bf16.mxu0 %v2553
    %2764 = vmatmul.mubr.bf16.gmra.mrb[0].mxu0 %v2552
    %v2765 = vpop.f32.mrb[0].mxu0
    %v2766 = vadd.f32 %v2617, %v2765
    %v2767 = vpop.f32.mrb[0].mxu0
    %v2768 = vpop.f32.mrb[0].mxu0
    %v2769 = vadd.f32 %v2617, %v2768
    %v2770 = vpop.f32.mrb[0].mxu0
    %2771 = vmatprep.mubr.bf16.mxu0 %v2555
    %2772 = vmatmul.mubr.bf16.gmra.mrb[0].mxu0 %v2554
    %v2773 = vpop.f32.mrb[0].mxu0
    %v2774 = vadd.f32 %v2617, %v2773
    %v2775 = vpop.f32.mrb[0].mxu0
    %v2776 = vpop.f32.mrb[0].mxu0
    %v2777 = vadd.f32 %v2617, %v2776
    %v2778 = vpop.f32.mrb[0].mxu0
    %2779 = vmatprep.mubr.bf16.mxu0 %v2557
    %2780 = vmatmul.mubr.bf16.gmra.mrb[0].mxu0 %v2556
    %v2781 = vpop.f32.mrb[0].mxu0
    %v2782 = vadd.f32 %v2617, %v2781
    %v2783 = vpop.f32.mrb[0].mxu0
    %v2784 = vpop.f32.mrb[0].mxu0
    %v2785 = vadd.f32 %v2617, %v2784
    %v2786 = vpop.f32.mrb[0].mxu0
    %2787 = vmatprep.mubr.bf16.mxu0 %v2559
    %2788 = vmatmul.mubr.bf16.gmra.mrb[0].mxu0 %v2558
    %v2789 = vpop.f32.mrb[0].mxu0
    %v2790 = vadd.f32 %v2617, %v2789
    %v2791 = vpop.f32.mrb[0].mxu0
    %v2792 = vpop.f32.mrb[0].mxu0
    %v2793 = vadd.f32 %v2617, %v2792
    %v2794 = vpop.f32.mrb[0].mxu0
    %2795 = vmatprep.mubr.bf16.mxu0 %v2561
    %2796 = vmatmul.mubr.bf16.gmra.mrb[0].mxu0 %v2560
    %v2797 = vpop.f32.mrb[0].mxu0
    %v2798 = vadd.f32 %v2617, %v2797
    %v2799 = vpop.f32.mrb[0].mxu0
    %v2800 = vpop.f32.mrb[0].mxu0
    %v2801 = vadd.f32 %v2617, %v2800
    %v2802 = vpop.f32.mrb[0].mxu0
    %2803 = vmatprep.mubr.bf16.mxu0 %v2563
    %2804 = vmatmul.mubr.bf16.gmra.mrb[0].mxu0 %v2562
    %v2805 = vpop.f32.mrb[0].mxu0
    %v2806 = vadd.f32 %v2617, %v2805
    %v2807 = vpop.f32.mrb[0].mxu0
    %v2808 = vpop.f32.mrb[0].mxu0
    %v2809 = vadd.f32 %v2617, %v2808
    %v2810 = vpop.f32.mrb[0].mxu0
    %2811 = vmatprep.mubr.bf16.mxu0 %v2565
    %2812 = vmatmul.mubr.bf16.gmra.mrb[0].mxu0 %v2564
    %v2813 = vpop.f32.mrb[0].mxu0
    %v2814 = vadd.f32 %v2617, %v2813
    %v2815 = vpop.f32.mrb[0].mxu0
    %v2816 = vpop.f32.mrb[0].mxu0
    %v2817 = vadd.f32 %v2617, %v2816
    %v2818 = vpop.f32.mrb[0].mxu0
    %2819 = vmatprep.mubr.bf16.mxu0 %v2567
    %2820 = vmatmul.mubr.bf16.gmra.mrb[0].mxu0 %v2566
    %v2821 = vpop.f32.mrb[0].mxu0
    %v2822 = vadd.f32 %v2617, %v2821
    %v2823 = vpop.f32.mrb[0].mxu0
    %v2824 = vpop.f32.mrb[0].mxu0
    %v2825 = vadd.f32 %v2617, %v2824
    %v2826 = vpop.f32.mrb[0].mxu0
    %2827 = vmatprep.mubr.bf16.mxu0 %v2569
    %2828 = vmatmul.mubr.bf16.gmra.mrb[0].mxu0 %v2568
    %v2829 = vpop.f32.mrb[0].mxu0
    %v2830 = vadd.f32 %v2617, %v2829
    %v2831 = vpop.f32.mrb[0].mxu0
    %v2832 = vpop.f32.mrb[0].mxu0
    %v2833 = vadd.f32 %v2617, %v2832
    %v2834 = vpop.f32.mrb[0].mxu0
    %2835 = vmatprep.mubr.bf16.mxu0 %v2571
    %2836 = vmatmul.mubr.bf16.gmra.mrb[0].mxu0 %v2570
    %v2837 = vpop.f32.mrb[0].mxu0
    %v2838 = vadd.f32 %v2617, %v2837
    %v2839 = vpop.f32.mrb[0].mxu0
    %v2840 = vpop.f32.mrb[0].mxu0
    %v2841 = vadd.f32 %v2617, %v2840
    %v2842 = vpop.f32.mrb[0].mxu0
    %2843 = vmatprep.mubr.bf16.mxu0 %v2573
    %2844 = vmatmul.mubr.bf16.gmra.mrb[0].mxu0 %v2572
    %v2845 = vpop.f32.mrb[0].mxu0
    %v2846 = vadd.f32 %v2617, %v2845
    %v2847 = vpop.f32.mrb[0].mxu0
    %v2848 = vpop.f32.mrb[0].mxu0
    %v2849 = vadd.f32 %v2617, %v2848
    %v2850 = vpop.f32.mrb[0].mxu0
    %2851 = vmatprep.mubr.bf16.mxu0 %v2575
    %2852 = vmatmul.mubr.bf16.gmra.mrb[0].mxu0 %v2574
    %v2853 = vpop.f32.mrb[0].mxu0
    %v2854 = vadd.f32 %v2617, %v2853
    %v2855 = vpop.f32.mrb[0].mxu0
    %v2856 = vpop.f32.mrb[0].mxu0
    %v2857 = vadd.f32 %v2617, %v2856
    %v2858 = vpop.f32.mrb[0].mxu0
    %2859 = vmatprep.mubr.bf16.mxu0 %v2577
    %2860 = vmatmul.mubr.bf16.gmra.mrb[0].mxu0 %v2576
    %v2861 = vpop.f32.mrb[0].mxu0
    %v2862 = vadd.f32 %v2617, %v2861
    %v2863 = vpop.f32.mrb[0].mxu0
    %v2864 = vpop.f32.mrb[0].mxu0
    %v2865 = vadd.f32 %v2617, %v2864
    %v2866 = vpop.f32.mrb[0].mxu0
    %2867 = vmatprep.mubr.bf16.mxu0 %v2579
    %2868 = vmatmul.mubr.bf16.gmra.mrb[0].mxu0 %v2578
    %v2869 = vpop.f32.mrb[0].mxu0
    %v2870 = vadd.f32 %v2617, %v2869
    %v2871 = vpop.f32.mrb[0].mxu0
    %v2872 = vpop.f32.mrb[0].mxu0
    %v2873 = vadd.f32 %v2617, %v2872
    %v2874 = vpop.f32.mrb[0].mxu0
    %2875 = vdwg.mxu0
    %v2876 = vxor.u32 %v2750, 2147483648
    %v2877 = vxor.u32 %v2753, 2147483648
    %v2878 = vxor.u32 %v2758, 2147483648
    %v2879 = vxor.u32 %v2761, 2147483648
    %v2880 = vxor.u32 %v2766, 2147483648
    %v2881 = vxor.u32 %v2769, 2147483648
    %v2882 = vxor.u32 %v2774, 2147483648
    %v2883 = vxor.u32 %v2777, 2147483648
    %v2884 = vxor.u32 %v2782, 2147483648
    %v2885 = vxor.u32 %v2785, 2147483648
    %v2886 = vxor.u32 %v2790, 2147483648
    %v2887 = vxor.u32 %v2793, 2147483648
    %v2888 = vxor.u32 %v2798, 2147483648
    %v2889 = vxor.u32 %v2801, 2147483648
    %v2890 = vxor.u32 %v2806, 2147483648
    %v2891 = vxor.u32 %v2809, 2147483648
    %v2892 = vxor.u32 %v2814, 2147483648
    %v2893 = vxor.u32 %v2817, 2147483648
    %v2894 = vxor.u32 %v2822, 2147483648
    %v2895 = vxor.u32 %v2825, 2147483648
    %v2896 = vxor.u32 %v2830, 2147483648
    %v2897 = vxor.u32 %v2833, 2147483648
    %v2898 = vxor.u32 %v2838, 2147483648
    %v2899 = vxor.u32 %v2841, 2147483648
    %v2900 = vxor.u32 %v2846, 2147483648
    %v2901 = vxor.u32 %v2849, 2147483648
    %v2902 = vxor.u32 %v2854, 2147483648
    %v2903 = vxor.u32 %v2857, 2147483648
    %v2904 = vxor.u32 %v2862, 2147483648
    %v2905 = vxor.u32 %v2865, 2147483648
    %v2906 = vxor.u32 %v2870, 2147483648
    %v2907 = vxor.u32 %v2873, 2147483648
    %v2908 = vmul.f32 %v2876, 1.442695
    %v2909 = vpow.pop %v2908
    %v2910 = vmul.f32 %v2877, 1.442695
    %v2911 = vpow.pop %v2910
    %v2912 = vmul.f32 %v2878, 1.442695
    %v2913 = vpow.pop %v2912
    %v2914 = vmul.f32 %v2879, 1.442695
    %v2915 = vpow.pop %v2914
    %v2916 = vmul.f32 %v2880, 1.442695
    %v2917 = vpow.pop %v2916
    %v2918 = vmul.f32 %v2881, 1.442695
    %v2919 = vpow.pop %v2918
    %v2920 = vmul.f32 %v2882, 1.442695
    %v2921 = vpow.pop %v2920
    %v2922 = vmul.f32 %v2883, 1.442695
    %v2923 = vpow.pop %v2922
    %v2924 = vmul.f32 %v2884, 1.442695
    %v2925 = vpow.pop %v2924
    %v2926 = vmul.f32 %v2885, 1.442695
    %v2927 = vpow.pop %v2926
    %v2928 = vmul.f32 %v2886, 1.442695
    %v2929 = vpow.pop %v2928
    %v2930 = vmul.f32 %v2887, 1.442695
    %v2931 = vpow.pop %v2930
    %v2932 = vmul.f32 %v2888, 1.442695
    %v2933 = vpow.pop %v2932
    %v2934 = vmul.f32 %v2889, 1.442695
    %v2935 = vpow.pop %v2934
    %v2936 = vmul.f32 %v2890, 1.442695
    %v2937 = vpow.pop %v2936
    %v2938 = vmul.f32 %v2891, 1.442695
    %v2939 = vpow.pop %v2938
    %v2940 = vmul.f32 %v2892, 1.442695
    %v2941 = vpow.pop %v2940
    %v2942 = vmul.f32 %v2893, 1.442695
    %v2943 = vpow.pop %v2942
    %v2944 = vmul.f32 %v2894, 1.442695
    %v2945 = vpow.pop %v2944
    %v2946 = vmul.f32 %v2895, 1.442695
    %v2947 = vpow.pop %v2946
    %v2948 = vmul.f32 %v2896, 1.442695
    %v2949 = vpow.pop %v2948
    %v2950 = vmul.f32 %v2897, 1.442695
    %v2951 = vpow.pop %v2950
    %v2952 = vmul.f32 %v2898, 1.442695
    %v2953 = vpow.pop %v2952
    %v2954 = vmul.f32 %v2899, 1.442695
    %v2955 = vpow.pop %v2954
    %v2956 = vmul.f32 %v2900, 1.442695
    %v2957 = vpow.pop %v2956
    %v2958 = vmul.f32 %v2901, 1.442695
    %v2959 = vpow.pop %v2958
    %v2960 = vmul.f32 %v2902, 1.442695
    %v2961 = vpow.pop %v2960
    %v2962 = vmul.f32 %v2903, 1.442695
    %v2963 = vpow.pop %v2962
    %v2964 = vmul.f32 %v2904, 1.442695
    %v2965 = vpow.pop %v2964
    %v2966 = vmul.f32 %v2905, 1.442695
    %v2967 = vpow.pop %v2966
    %v2968 = vmul.f32 %v2906, 1.442695
    %v2969 = vpow.pop %v2968
    %v2970 = vmul.f32 %v2907, 1.442695
    %v2971 = vpow.pop %v2970
    %v2972 = vadd.f32 %v2909, 1.0
    %v2973 = vadd.f32 %v2911, 1.0
    %v2974 = vadd.f32 %v2913, 1.0
    %v2975 = vadd.f32 %v2915, 1.0
    %v2976 = vadd.f32 %v2917, 1.0
    %v2977 = vadd.f32 %v2919, 1.0
    %v2978 = vadd.f32 %v2921, 1.0
    %v2979 = vadd.f32 %v2923, 1.0
    %v2980 = vadd.f32 %v2925, 1.0
    %v2981 = vadd.f32 %v2927, 1.0
    %v2982 = vadd.f32 %v2929, 1.0
    %v2983 = vadd.f32 %v2931, 1.0
    %v2984 = vadd.f32 %v2933, 1.0
    %v2985 = vadd.f32 %v2935, 1.0
    %v2986 = vadd.f32 %v2937, 1.0
    %v2987 = vadd.f32 %v2939, 1.0
    %v2988 = vadd.f32 %v2941, 1.0
    %v2989 = vadd.f32 %v2943, 1.0
    %v2990 = vadd.f32 %v2945, 1.0
    %v2991 = vadd.f32 %v2947, 1.0
    %v2992 = vadd.f32 %v2949, 1.0
    %v2993 = vadd.f32 %v2951, 1.0
    %v2994 = vadd.f32 %v2953, 1.0
    %v2995 = vadd.f32 %v2955, 1.0
    %v2996 = vadd.f32 %v2957, 1.0
    %v2997 = vadd.f32 %v2959, 1.0
    %v2998 = vadd.f32 %v2961, 1.0
    %v2999 = vadd.f32 %v2963, 1.0
    %v3000 = vadd.f32 %v2965, 1.0
    %v3001 = vadd.f32 %v2967, 1.0
    %v3002 = vadd.f32 %v2969, 1.0
    %v3003 = vadd.f32 %v2971, 1.0
    %v3004 = vrcp.pop %v2972
    %v3005 = vmul.f32 1.0, %v3004
    %v3006 = vrcp.pop %v2973
    %v3007 = vmul.f32 1.0, %v3006
    %v3008 = vrcp.pop %v2974
    %v3009 = vmul.f32 1.0, %v3008
    %v3010 = vrcp.pop %v2975
    %v3011 = vmul.f32 1.0, %v3010
    %v3012 = vrcp.pop %v2976
    %v3013 = vmul.f32 1.0, %v3012
    %v3014 = vrcp.pop %v2977
    %v3015 = vmul.f32 1.0, %v3014
    %v3016 = vrcp.pop %v2978
    %v3017 = vmul.f32 1.0, %v3016
    %v3018 = vrcp.pop %v2979
    %v3019 = vmul.f32 1.0, %v3018
    %v3020 = vrcp.pop %v2980
    %v3021 = vmul.f32 1.0, %v3020
    %v3022 = vrcp.pop %v2981
    %v3023 = vmul.f32 1.0, %v3022
    %v3024 = vrcp.pop %v2982
    %v3025 = vmul.f32 1.0, %v3024
    %v3026 = vrcp.pop %v2983
    %v3027 = vmul.f32 1.0, %v3026
    %v3028 = vrcp.pop %v2984
    %v3029 = vmul.f32 1.0, %v3028
    %v3030 = vrcp.pop %v2985
    %v3031 = vmul.f32 1.0, %v3030
    %v3032 = vrcp.pop %v2986
    %v3033 = vmul.f32 1.0, %v3032
    %v3034 = vrcp.pop %v2987
    %v3035 = vmul.f32 1.0, %v3034
    %v3036 = vrcp.pop %v2988
    %v3037 = vmul.f32 1.0, %v3036
    %v3038 = vrcp.pop %v2989
    %v3039 = vmul.f32 1.0, %v3038
    %v3040 = vrcp.pop %v2990
    %v3041 = vmul.f32 1.0, %v3040
    %v3042 = vrcp.pop %v2991
    %v3043 = vmul.f32 1.0, %v3042
    %v3044 = vrcp.pop %v2992
    %v3045 = vmul.f32 1.0, %v3044
    %v3046 = vrcp.pop %v2993
    %v3047 = vmul.f32 1.0, %v3046
    %v3048 = vrcp.pop %v2994
    %v3049 = vmul.f32 1.0, %v3048
    %v3050 = vrcp.pop %v2995
    %v3051 = vmul.f32 1.0, %v3050
    %v3052 = vrcp.pop %v2996
    %v3053 = vmul.f32 1.0, %v3052
    %v3054 = vrcp.pop %v2997
    %v3055 = vmul.f32 1.0, %v3054
    %v3056 = vrcp.pop %v2998
    %v3057 = vmul.f32 1.0, %v3056
    %v3058 = vrcp.pop %v2999
    %v3059 = vmul.f32 1.0, %v3058
    %v3060 = vrcp.pop %v3000
    %v3061 = vmul.f32 1.0, %v3060
    %v3062 = vrcp.pop %v3001
    %v3063 = vmul.f32 1.0, %v3062
    %v3064 = vrcp.pop %v3002
    %v3065 = vmul.f32 1.0, %v3064
    %v3066 = vrcp.pop %v3003
    %v3067 = vmul.f32 1.0, %v3066
    %3068 = vst [vmem:[#allocation7] sm:$0xff] %v3005
    %3069 = vst [vmem:[#allocation7 + $0x8] sm:$0xff] %v3007
    %3070 = vst [vmem:[#allocation7 + $0x10] sm:$0xff] %v3009
    %3071 = vst [vmem:[#allocation7 + $0x18] sm:$0xff] %v3011
    %3072 = vst [vmem:[#allocation7 + $0x20] sm:$0xff] %v3013
    %3073 = vst [vmem:[#allocation7 + $0x28] sm:$0xff] %v3015
    %3074 = vst [vmem:[#allocation7 + $0x30] sm:$0xff] %v3017
    %3075 = vst [vmem:[#allocation7 + $0x38] sm:$0xff] %v3019
    %3076 = vst [vmem:[#allocation7 + $0x40] sm:$0xff] %v3021
    %3077 = vst [vmem:[#allocation7 + $0x48] sm:$0xff] %v3023
    %3078 = vst [vmem:[#allocation7 + $0x50] sm:$0xff] %v3025
    %3079 = vst [vmem:[#allocation7 + $0x58] sm:$0xff] %v3027
    %3080 = vst [vmem:[#allocation7 + $0x60] sm:$0xff] %v3029
    %3081 = vst [vmem:[#allocation7 + $0x68] sm:$0xff] %v3031
    %3082 = vst [vmem:[#allocation7 + $0x70] sm:$0xff] %v3033
    %3083 = vst [vmem:[#allocation7 + $0x78] sm:$0xff] %v3035
    %3084 = vst [vmem:[#allocation7 + $0x80] sm:$0xff] %v3037
    %3085 = vst [vmem:[#allocation7 + $0x88] sm:$0xff] %v3039
    %3086 = vst [vmem:[#allocation7 + $0x90] sm:$0xff] %v3041
    %3087 = vst [vmem:[#allocation7 + $0x98] sm:$0xff] %v3043
    %3088 = vst [vmem:[#allocation7 + $0xa0] sm:$0xff] %v3045
    %3089 = vst [vmem:[#allocation7 + $0xa8] sm:$0xff] %v3047
    %3090 = vst [vmem:[#allocation7 + $0xb0] sm:$0xff] %v3049
    %3091 = vst [vmem:[#allocation7 + $0xb8] sm:$0xff] %v3051
    %3092 = vst [vmem:[#allocation7 + $0xc0] sm:$0xff] %v3053
    %3093 = vst [vmem:[#allocation7 + $0xc8] sm:$0xff] %v3055
    %3094 = vst [vmem:[#allocation7 + $0xd0] sm:$0xff] %v3057
    %3095 = vst [vmem:[#allocation7 + $0xd8] sm:$0xff] %v3059
    %3096 = vst [vmem:[#allocation7 + $0xe0] sm:$0xff] %v3061
    %3097 = vst [vmem:[#allocation7 + $0xe8] sm:$0xff] %v3063
    %3098 = vst [vmem:[#allocation7 + $0xf0] sm:$0xff] %v3065
    %3099 = vst [vmem:[#allocation7 + $0xf8] sm:$0xff] %v3067
    // Predicated region
    $region46: #{generator_forward_pallas.1} parent=1 // pred_check
      _
    $region47: #{generator_forward_pallas.1} parent=1 // pred_check_branch
      %3101 = sbr.rel (0) target = $region49
    $region48: #{generator_forward_pallas.1} parent=1 // pred_region
      %s3103 = ssub.s32 4096, 4096
      %3104 = vsyncadd [#allocation4], %s3103
      %s3105 = sshll.u32 [#allocation7], 4
      %s3106 = int_to_ptr.vmem [resolvable:$true] %s3105
      %3111 = dma.vmem_to_hbm [thread:$0]  %s3106, 4096, %s9, [#allocation4], 128, 128, 8
    $region49: #{generator_forward_pallas.1} parent=1 // pred_fallthru
      _
    // Predicated region
    $region50: #{generator_forward_pallas.1} parent=1 // pred_check
      _
    $region51: #{generator_forward_pallas.1} parent=1 // pred_check_branch
      %3113 = sbr.rel (0) target = $region53
    $region52: #{generator_forward_pallas.1} parent=1 // pred_region
      %3114 = dma.done [#allocation4], 4096
    $region53: #{generator_forward_pallas.1} parent=1 // pred_fallthru
      _
    %3115 = vsyncpa [#allocation3], 1
    %3116 = vsyncpa [#allocation6], 1
    %3117 = vsyncpa [#allocation4], 1

</llo_original>
